<compile_context>
chip_gen: v7x
topology: tpu7x:2x2x1
jax: 0.10.0
libtpu: 0.0.40
codegen_flags: <defaults>
</compile_context>

<pallas_src>
import jax
import jax.numpy as jnp
import numpy as np
from jax import lax
from jax.experimental import pallas as pl
from jax.experimental.pallas import tpu as pltpu

# ----------------------------- config ---------------------------------------
S = 8          # sequence length
B = 2          # batch
D_MODEL = 32   # d_model
N_HEADS = 4    # heads
D_FF = 64      # dim_forward
HEAD_DIM = D_MODEL // N_HEADS
N_TOK = S * B  # flattened (seq, batch) rows
LN_EPS = 1e-5


# ----------------------------- Pallas kernel --------------------------------
def encoder_kernel(xp_ref, wa_ref, wf_ref, mask_ref, out_ref):
    D, H, hd, N = D_MODEL, N_HEADS, HEAD_DIM, N_TOK

    x = xp_ref[0:N, :]            # (N, D) value / residual stream
    pos = xp_ref[N:2 * N, :]      # (N, D)
    qk_in = x + pos               # q = k = src + pos

    # single (D+3, 4D) = (35, 128) attention slab — one lane tile wide
    wa = wa_ref[...]
    w_qk = wa[0:D, 0:2 * D]       # [Wq^T*scale | Wk^T]   (32, 64)
    w_v = wa[0:D, 2 * D:3 * D]    # Wv^T                  (32, 32)
    w_o = wa[0:D, 3 * D:4 * D]    # Wo^T                  (32, 32)
    b_qk = wa[D:D + 1, 0:2 * D]   # [bq*scale | bk]       (1, 64)
    b_v = wa[D:D + 1, 2 * D:3 * D]
    b_o = wa[D:D + 1, 3 * D:4 * D]
    b2 = wa[D + 1:D + 2, 0:D]
    g1 = wa[D + 1:D + 2, D:2 * D]
    be1 = wa[D + 1:D + 2, 2 * D:3 * D]
    g2 = wa[D + 1:D + 2, 3 * D:4 * D]
    be2 = wa[D + 2:D + 3, 0:D]

    # --- lane-dense fused Q/K and V projections (scale folded into Q) ---
    qk = jnp.dot(qk_in, w_qk, preferred_element_type=jnp.float32) + b_qk   # (N, 2D)
    v = jnp.dot(x, w_v, preferred_element_type=jnp.float32) + b_v          # (N, D)

    # --- per-head scores (unrolled over H=4; static lane slices, NT matmuls) ---
    nt = (((1,), (1,)), ((), ()))
    s = jnp.stack(
        [lax.dot_general(qk[:, h * hd:(h + 1) * hd],
                         qk[:, D + h * hd:D + (h + 1) * hd],
                         nt, preferred_element_type=jnp.float32)
         for h in range(H)], axis=0)                    # (H, N, N)
    s = s + mask_ref[...][None]                         # precomputed block-diag mask

    # stable softmax; EUP approx reciprocal + one Newton step -> exact f32
    s = s - jnp.max(s, axis=-1, keepdims=True)
    e = jnp.exp(s)
    denom = jnp.sum(e, axis=-1, keepdims=True)
    inv = pl.reciprocal(denom, approx=True)
    inv = inv * (2.0 - denom * inv)
    a = e * inv                                         # (H, N, N)

    # --- per-head AV, merge heads along lanes, one lane-dense output proj ---
    ctx = jnp.concatenate(
        [jnp.dot(a[h], v[:, h * hd:(h + 1) * hd], preferred_element_type=jnp.float32)
         for h in range(H)], axis=1)                    # (N, D)
    attn_out = jnp.dot(ctx, w_o, preferred_element_type=jnp.float32) + b_o

    # --- residual + LayerNorm1 (dropout1 identity in eval) ---
    h1 = x + attn_out
    mu = jnp.mean(h1, axis=-1, keepdims=True)
    var = jnp.mean((h1 - mu) ** 2, axis=-1, keepdims=True)
    h1 = (h1 - mu) * lax.rsqrt(var + LN_EPS) * g1 + be1

    # --- feed-forward: linear2(relu(linear1(x))); single (65,64) FFN slab ---
    wf = wf_ref[...]
    w1 = wf[0:D, :]               # W1^T (32, 64)
    w2 = wf[D:2 * D, :]           # W2 native (32, 64), contracted on lanes (NT)
    b1 = wf[2 * D:2 * D + 1, :]   # (1, 64)
    f = jnp.dot(h1, w1, preferred_element_type=jnp.float32) + b1
    f = jnp.maximum(f, 0.0)
    f = lax.dot_general(f, w2, nt, preferred_element_type=jnp.float32) + b2

    # --- residual + LayerNorm2 (dropout2 identity in eval) ---
    h2 = h1 + f
    mu2 = jnp.mean(h2, axis=-1, keepdims=True)
    var2 = jnp.mean((h2 - mu2) ** 2, axis=-1, keepdims=True)
    out_ref[...] = (h2 - mu2) * lax.rsqrt(var2 + LN_EPS) * g2 + be2


# ----------------------------- host-side prep --------------------------------
def prepare_params(params):
    """One-time host-side repack into two lane-dense slabs + a static mask."""
    D = D_MODEL
    scale = float(HEAD_DIM) ** -0.5

    # attention slab (D+3, 4D) = (35, 128): exactly one 128-lane tile wide.
    w_rows = jnp.concatenate(
        [params["wq"].T * scale, params["wk"].T, params["wv"].T, params["wo"].T],
        axis=1)                                                          # (32, 128)
    b_row0 = jnp.concatenate(
        [params["bq"] * scale, params["bk"], params["bv"], params["bo"]], axis=1)
    b_row1 = jnp.concatenate(
        [params["b2"], params["g1"], params["be1"], params["g2"]], axis=1)
    b_row2 = jnp.concatenate(
        [params["be2"], jnp.zeros((1, 3 * D), jnp.float32)], axis=1)
    w_attn = jnp.concatenate([w_rows, b_row0, b_row1, b_row2],
                             axis=0).astype(jnp.float32)                 # (35, 128)

    # FFN slab (2D+1, D_FF) = (65, 64): rows 0:32 = W1^T, 32:64 = W2 (native), 64 = b1
    w_ffn = jnp.concatenate(
        [params["w1"].T, params["w2"], params["b1"]], axis=0).astype(jnp.float32)

    # static block-diagonal (same-batch) additive mask for the row-major
    # (S, B) -> (S*B) flatten: token row n belongs to batch n % B.
    r = np.arange(N_TOK)
    mask = np.where((r[:, None] % B) == (r[None, :] % B), 0.0, -1e30).astype(np.float32)

    return {"w_attn": w_attn, "w_ffn": w_ffn, "mask": jnp.asarray(mask)}


def transformer_encoder_pallas(src_sbd, pos_sbd, prep):
    """src_sbd, pos_sbd: (S, B, D) float32 — PyTorch (seq, batch, embed) layout.
    NOTE: the (S, B, D) -> (S*B, D) flatten must stay row-major: the
    precomputed block-diagonal mask assumes token row n belongs to batch n % B."""
    xp = jnp.concatenate(
        [src_sbd.reshape(N_TOK, D_MODEL), pos_sbd.reshape(N_TOK, D_MODEL)],
        axis=0)                                                          # (2N, D)

    def vmem():
        return pl.BlockSpec(memory_space=pltpu.MemorySpace.VMEM)

    flops = 2 * (N_TOK * D_MODEL * 2 * D_MODEL            # QK projection
                 + N_TOK * D_MODEL * D_MODEL               # V projection
                 + 2 * N_HEADS * N_TOK * N_TOK * HEAD_DIM  # scores + AV
                 + N_TOK * D_MODEL * D_MODEL               # output projection
                 + 2 * N_TOK * D_MODEL * D_FF)             # FFN
    transcendentals = N_HEADS * N_TOK * N_TOK + N_HEADS * N_TOK + 2 * N_TOK
    bytes_accessed = 4 * (xp.size + prep["w_attn"].size + prep["w_ffn"].size
                          + prep["mask"].size + N_TOK * D_MODEL)

    # Single program, whole arrays resident in VMEM (< 64 KiB total).
    # TODO(synk): for large S*B on v7x, add a token-tile grid with
    #             dimension_semantics=("parallel",) to use both TensorCores,
    #             and switch to KV-tiled online softmax before scores hit VMEM.
    out = pl.pallas_call(
        encoder_kernel,
        out_shape=jax.ShapeDtypeStruct((N_TOK, D_MODEL), jnp.float32),
        in_specs=[vmem(), vmem(), vmem(), vmem()],
        out_specs=vmem(),
        cost_estimate=pl.CostEstimate(flops=flops,
                                      transcendentals=transcendentals,
                                      bytes_accessed=bytes_accessed),
    )(xp, prep["w_attn"], prep["w_ffn"], prep["mask"])

    return out.reshape(S, B, D_MODEL)


# ----------------------------- pure-JAX reference ----------------------------
def transformer_encoder_ref(src_sbd, pos_sbd, params):
    x = jnp.transpose(src_sbd, (1, 0, 2))   # (B, S, D)
    p = jnp.transpose(pos_sbd, (1, 0, 2))
    qk = x + p
    q = qk @ params["wq"].T + params["bq"]
    k = qk @ params["wk"].T + params["bk"]
    v = x @ params["wv"].T + params["bv"]

    def split(t):  # (B, S, D) -> (B, H, S, hd)
        return t.reshape(B, S, N_HEADS, HEAD_DIM).transpose(0, 2, 1, 3)

    qh, kh, vh = split(q), split(k), split(v)
    s = jnp.einsum("bhqd,bhkd->bhqk", qh * (HEAD_DIM ** -0.5), kh)
    a = jax.nn.softmax(s, axis=-1)
    ctx = jnp.einsum("bhqk,bhkd->bhqd", a, vh).transpose(0, 2, 1, 3).reshape(B, S, D_MODEL)
    attn_out = ctx @ params["wo"].T + params["bo"]

    def ln(t, g, b):
        mu = jnp.mean(t, axis=-1, keepdims=True)
        var = jnp.mean((t - mu) ** 2, axis=-1, keepdims=True)
        return (t - mu) * jax.lax.rsqrt(var + LN_EPS) * g + b

    h1 = ln(x + attn_out, params["g1"], params["be1"])
    f = jnp.maximum(h1 @ params["w1"].T + params["b1"], 0.0) @ params["w2"].T + params["b2"]
    h2 = ln(h1 + f, params["g2"], params["be2"])
    return jnp.transpose(h2, (1, 0, 2))


# ----------------------------- main ------------------------------------------
if __name__ == "__main__":
    key = jax.random.PRNGKey(0)
    keys = jax.random.split(key, 20)

    def nrm(k, shape, scale=0.05):
        return (scale * jax.random.normal(k, shape)).astype(jnp.float32)

    params = {
        # in_proj of nn.MultiheadAttention split into q/k/v pieces
        "wq": nrm(keys[0], (D_MODEL, D_MODEL)),
        "wk": nrm(keys[1], (D_MODEL, D_MODEL)),
        "wv": nrm(keys[2], (D_MODEL, D_MODEL)),
        "bq": nrm(keys[3], (1, D_MODEL)),
        "bk": nrm(keys[4], (1, D_MODEL)),
        "bv": nrm(keys[5], (1, D_MODEL)),
        "wo": nrm(keys[6], (D_MODEL, D_MODEL)),
        "bo": nrm(keys[7], (1, D_MODEL)),
        # FFN
        "w1": nrm(keys[8], (D_FF, D_MODEL)),
        "b1": nrm(keys[9], (1, D_FF)),
        "w2": nrm(keys[10], (D_MODEL, D_FF)),
        "b2": nrm(keys[11], (1, D_MODEL)),
        # LayerNorms
        "g1": (1.0 + nrm(keys[12], (1, D_MODEL), 0.1)),
        "be1": nrm(keys[13], (1, D_MODEL), 0.1),
        "g2": (1.0 + nrm(keys[14], (1, D_MODEL), 0.1)),
        "be2": nrm(keys[15], (1, D_MODEL), 0.1),
    }

    src = jax.random.normal(keys[16], (S, B, D_MODEL), dtype=jnp.float32)
    pos = jax.random.normal(keys[17], (S, B, D_MODEL), dtype=jnp.float32)

    prep = prepare_params(params)

    # TODO(synk): src_mask / src_key_padding_mask paths not exercised (None in this synthetic run).
    out = jax.block_until_ready(transformer_encoder_pallas(src, pos, prep))
    ref = jax.block_until_ready(transformer_encoder_ref(src, pos, params))

    np.testing.assert_allclose(np.asarray(out), np.asarray(ref), rtol=1e-4, atol=1e-4)
    assert out.shape == (S, B, D_MODEL)
    print("KERNEL_OK")
</pallas_src>

<mosaic_0001>
module attributes {stable_mosaic.version = 11 : i64} {
  func.func @encoder_kernel(%arg0: memref<32x32xf32, #tpu.memory_space<vmem>>, %arg1: memref<35x128xf32, #tpu.memory_space<vmem>>, %arg2: memref<65x64xf32, #tpu.memory_space<vmem>>, %arg3: memref<16x16xf32, #tpu.memory_space<vmem>>, %arg4: memref<16x32xf32, #tpu.memory_space<vmem>>) attributes {dimension_semantics = [], scalar_prefetch = 0 : i64, scratch_operands = 0 : i64, tpu.core_type = #tpu.core_type<tc>} {
    %c0 = arith.constant 0 : index
    %c0_0 = arith.constant 0 : index
    %0 = vector.load %arg0[%c0, %c0_0] : memref<32x32xf32, #tpu.memory_space<vmem>>, vector<16x32xf32>
    %c16 = arith.constant 16 : index
    %c0_1 = arith.constant 0 : index
    %1 = vector.load %arg0[%c16, %c0_1] : memref<32x32xf32, #tpu.memory_space<vmem>>, vector<16x32xf32>
    %2 = arith.addf %0, %1 : vector<16x32xf32>
    %c0_2 = arith.constant 0 : index
    %c0_3 = arith.constant 0 : index
    %3 = vector.load %arg1[%c0_2, %c0_3] : memref<35x128xf32, #tpu.memory_space<vmem>>, vector<35x128xf32>
    %4 = vector.extract_strided_slice %3 {offsets = [0, 0], sizes = [32, 64], strides = [1, 1]} : vector<35x128xf32> to vector<32x64xf32>
    %5 = vector.extract_strided_slice %3 {offsets = [0, 64], sizes = [32, 32], strides = [1, 1]} : vector<35x128xf32> to vector<32x32xf32>
    %6 = vector.extract_strided_slice %3 {offsets = [0, 96], sizes = [32, 32], strides = [1, 1]} : vector<35x128xf32> to vector<32x32xf32>
    %7 = vector.extract_strided_slice %3 {offsets = [32, 0], sizes = [1, 64], strides = [1, 1]} : vector<35x128xf32> to vector<1x64xf32>
    %8 = vector.extract_strided_slice %3 {offsets = [32, 64], sizes = [1, 32], strides = [1, 1]} : vector<35x128xf32> to vector<1x32xf32>
    %9 = vector.extract_strided_slice %3 {offsets = [32, 96], sizes = [1, 32], strides = [1, 1]} : vector<35x128xf32> to vector<1x32xf32>
    %10 = vector.extract_strided_slice %3 {offsets = [33, 0], sizes = [1, 32], strides = [1, 1]} : vector<35x128xf32> to vector<1x32xf32>
    %11 = vector.extract_strided_slice %3 {offsets = [33, 32], sizes = [1, 32], strides = [1, 1]} : vector<35x128xf32> to vector<1x32xf32>
    %12 = vector.extract_strided_slice %3 {offsets = [33, 64], sizes = [1, 32], strides = [1, 1]} : vector<35x128xf32> to vector<1x32xf32>
    %13 = vector.extract_strided_slice %3 {offsets = [33, 96], sizes = [1, 32], strides = [1, 1]} : vector<35x128xf32> to vector<1x32xf32>
    %14 = vector.extract_strided_slice %3 {offsets = [34, 0], sizes = [1, 32], strides = [1, 1]} : vector<35x128xf32> to vector<1x32xf32>
    %cst = arith.constant dense<0.000000e+00> : vector<16x64xf32>
    %15 = tpu.matmul %2, %4, %cst {dimension_numbers = #tpu.dot_dimension_numbers<[1], [0], [0], [1], [0, 0, 1, 1], [], []>} : vector<16x32xf32>, vector<32x64xf32>, vector<16x64xf32> -> vector<16x64xf32>
    %16 = vector.broadcast %7 : vector<1x64xf32> to vector<16x64xf32>
    %17 = arith.addf %15, %16 : vector<16x64xf32>
    %cst_4 = arith.constant dense<0.000000e+00> : vector<16x32xf32>
    %18 = tpu.matmul %0, %5, %cst_4 {dimension_numbers = #tpu.dot_dimension_numbers<[1], [0], [0], [1], [0, 0, 1, 1], [], []>} : vector<16x32xf32>, vector<32x32xf32>, vector<16x32xf32> -> vector<16x32xf32>
    %19 = vector.broadcast %8 : vector<1x32xf32> to vector<16x32xf32>
    %20 = arith.addf %18, %19 : vector<16x32xf32>
    %21 = vector.extract_strided_slice %17 {offsets = [0, 0], sizes = [16, 8], strides = [1, 1]} : vector<16x64xf32> to vector<16x8xf32>
    %22 = vector.extract_strided_slice %17 {offsets = [0, 32], sizes = [16, 8], strides = [1, 1]} : vector<16x64xf32> to vector<16x8xf32>
    %cst_5 = arith.constant dense<0.000000e+00> : vector<16x16xf32>
    %23 = tpu.matmul %21, %22, %cst_5 {dimension_numbers = #tpu.dot_dimension_numbers<[1], [1], [0], [0], [0, 0, 1, 0], [], []>} : vector<16x8xf32>, vector<16x8xf32>, vector<16x16xf32> -> vector<16x16xf32>
    %24 = vector.extract_strided_slice %17 {offsets = [0, 8], sizes = [16, 8], strides = [1, 1]} : vector<16x64xf32> to vector<16x8xf32>
    %25 = vector.extract_strided_slice %17 {offsets = [0, 40], sizes = [16, 8], strides = [1, 1]} : vector<16x64xf32> to vector<16x8xf32>
    %cst_6 = arith.constant dense<0.000000e+00> : vector<16x16xf32>
    %26 = tpu.matmul %24, %25, %cst_6 {dimension_numbers = #tpu.dot_dimension_numbers<[1], [1], [0], [0], [0, 0, 1, 0], [], []>} : vector<16x8xf32>, vector<16x8xf32>, vector<16x16xf32> -> vector<16x16xf32>
    %27 = vector.extract_strided_slice %17 {offsets = [0, 16], sizes = [16, 8], strides = [1, 1]} : vector<16x64xf32> to vector<16x8xf32>
    %28 = vector.extract_strided_slice %17 {offsets = [0, 48], sizes = [16, 8], strides = [1, 1]} : vector<16x64xf32> to vector<16x8xf32>
    %cst_7 = arith.constant dense<0.000000e+00> : vector<16x16xf32>
    %29 = tpu.matmul %27, %28, %cst_7 {dimension_numbers = #tpu.dot_dimension_numbers<[1], [1], [0], [0], [0, 0, 1, 0], [], []>} : vector<16x8xf32>, vector<16x8xf32>, vector<16x16xf32> -> vector<16x16xf32>
    %30 = vector.extract_strided_slice %17 {offsets = [0, 24], sizes = [16, 8], strides = [1, 1]} : vector<16x64xf32> to vector<16x8xf32>
    %31 = vector.extract_strided_slice %17 {offsets = [0, 56], sizes = [16, 8], strides = [1, 1]} : vector<16x64xf32> to vector<16x8xf32>
    %cst_8 = arith.constant dense<0.000000e+00> : vector<16x16xf32>
    %32 = tpu.matmul %30, %31, %cst_8 {dimension_numbers = #tpu.dot_dimension_numbers<[1], [1], [0], [0], [0, 0, 1, 0], [], []>} : vector<16x8xf32>, vector<16x8xf32>, vector<16x16xf32> -> vector<16x16xf32>
    %33 = vector.shape_cast %23 : vector<16x16xf32> to vector<1x16x16xf32>
    %34 = vector.shape_cast %26 : vector<16x16xf32> to vector<1x16x16xf32>
    %35 = vector.shape_cast %29 : vector<16x16xf32> to vector<1x16x16xf32>
    %36 = vector.shape_cast %32 : vector<16x16xf32> to vector<1x16x16xf32>
    %37 = tpu.concatenate %33, %34, %35, %36 in 0 : vector<1x16x16xf32>, vector<1x16x16xf32>, vector<1x16x16xf32>, vector<1x16x16xf32> -> vector<4x16x16xf32>
    %c0_9 = arith.constant 0 : index
    %c0_10 = arith.constant 0 : index
    %38 = vector.load %arg3[%c0_9, %c0_10] : memref<16x16xf32, #tpu.memory_space<vmem>>, vector<16x16xf32>
    %39 = vector.shape_cast %38 : vector<16x16xf32> to vector<1x16x16xf32>
    %40 = vector.broadcast %39 : vector<1x16x16xf32> to vector<4x16x16xf32>
    %41 = arith.addf %37, %40 : vector<4x16x16xf32>
    %cst_11 = arith.constant dense<0xFF800000> : vector<4x16xf32>
    %42 = vector.multi_reduction <maximumf>, %41, %cst_11 [2] : vector<4x16x16xf32> to vector<4x16xf32>
    %43 = vector.shape_cast %42 : vector<4x16xf32> to vector<4x16x1xf32>
    %44 = vector.broadcast %43 : vector<4x16x1xf32> to vector<4x16x16xf32>
    %45 = arith.subf %41, %44 : vector<4x16x16xf32>
    %46 = math.exp %45 : vector<4x16x16xf32>
    %cst_12 = arith.constant dense<0.000000e+00> : vector<4x16xf32>
    %47 = vector.multi_reduction <add>, %46, %cst_12 [2] : vector<4x16x16xf32> to vector<4x16xf32>
    %48 = vector.shape_cast %47 : vector<4x16xf32> to vector<4x16x1xf32>
    %49 = tpu.reciprocal %48 {approx = true} : vector<4x16x1xf32> -> vector<4x16x1xf32>
    %50 = arith.mulf %48, %49 : vector<4x16x1xf32>
    %cst_13 = arith.constant 2.000000e+00 : f32
    %51 = vector.broadcast %cst_13 : f32 to vector<4x16x1xf32>
    %52 = arith.subf %51, %50 : vector<4x16x1xf32>
    %53 = arith.mulf %49, %52 : vector<4x16x1xf32>
    %54 = vector.broadcast %53 : vector<4x16x1xf32> to vector<4x16x16xf32>
    %55 = arith.mulf %46, %54 : vector<4x16x16xf32>
    %56 = vector.extract_strided_slice %55 {offsets = [0, 0, 0], sizes = [1, 16, 16], strides = [1, 1, 1]} : vector<4x16x16xf32> to vector<1x16x16xf32>
    %57 = vector.shape_cast %56 : vector<1x16x16xf32> to vector<16x16xf32>
    %58 = vector.extract_strided_slice %20 {offsets = [0, 0], sizes = [16, 8], strides = [1, 1]} : vector<16x32xf32> to vector<16x8xf32>
    %cst_14 = arith.constant dense<0.000000e+00> : vector<16x8xf32>
    %59 = tpu.matmul %57, %58, %cst_14 {dimension_numbers = #tpu.dot_dimension_numbers<[1], [0], [0], [1], [0, 0, 1, 1], [], []>} : vector<16x16xf32>, vector<16x8xf32>, vector<16x8xf32> -> vector<16x8xf32>
    %60 = vector.extract_strided_slice %55 {offsets = [1, 0, 0], sizes = [1, 16, 16], strides = [1, 1, 1]} : vector<4x16x16xf32> to vector<1x16x16xf32>
    %61 = vector.shape_cast %60 : vector<1x16x16xf32> to vector<16x16xf32>
    %62 = vector.extract_strided_slice %20 {offsets = [0, 8], sizes = [16, 8], strides = [1, 1]} : vector<16x32xf32> to vector<16x8xf32>
    %cst_15 = arith.constant dense<0.000000e+00> : vector<16x8xf32>
    %63 = tpu.matmul %61, %62, %cst_15 {dimension_numbers = #tpu.dot_dimension_numbers<[1], [0], [0], [1], [0, 0, 1, 1], [], []>} : vector<16x16xf32>, vector<16x8xf32>, vector<16x8xf32> -> vector<16x8xf32>
    %64 = vector.extract_strided_slice %55 {offsets = [2, 0, 0], sizes = [1, 16, 16], strides = [1, 1, 1]} : vector<4x16x16xf32> to vector<1x16x16xf32>
    %65 = vector.shape_cast %64 : vector<1x16x16xf32> to vector<16x16xf32>
    %66 = vector.extract_strided_slice %20 {offsets = [0, 16], sizes = [16, 8], strides = [1, 1]} : vector<16x32xf32> to vector<16x8xf32>
    %cst_16 = arith.constant dense<0.000000e+00> : vector<16x8xf32>
    %67 = tpu.matmul %65, %66, %cst_16 {dimension_numbers = #tpu.dot_dimension_numbers<[1], [0], [0], [1], [0, 0, 1, 1], [], []>} : vector<16x16xf32>, vector<16x8xf32>, vector<16x8xf32> -> vector<16x8xf32>
    %68 = vector.extract_strided_slice %55 {offsets = [3, 0, 0], sizes = [1, 16, 16], strides = [1, 1, 1]} : vector<4x16x16xf32> to vector<1x16x16xf32>
    %69 = vector.shape_cast %68 : vector<1x16x16xf32> to vector<16x16xf32>
    %70 = vector.extract_strided_slice %20 {offsets = [0, 24], sizes = [16, 8], strides = [1, 1]} : vector<16x32xf32> to vector<16x8xf32>
    %cst_17 = arith.constant dense<0.000000e+00> : vector<16x8xf32>
    %71 = tpu.matmul %69, %70, %cst_17 {dimension_numbers = #tpu.dot_dimension_numbers<[1], [0], [0], [1], [0, 0, 1, 1], [], []>} : vector<16x16xf32>, vector<16x8xf32>, vector<16x8xf32> -> vector<16x8xf32>
    %72 = tpu.concatenate %59, %63, %67, %71 in 1 : vector<16x8xf32>, vector<16x8xf32>, vector<16x8xf32>, vector<16x8xf32> -> vector<16x32xf32>
    %cst_18 = arith.constant dense<0.000000e+00> : vector<16x32xf32>
    %73 = tpu.matmul %72, %6, %cst_18 {dimension_numbers = #tpu.dot_dimension_numbers<[1], [0], [0], [1], [0, 0, 1, 1], [], []>} : vector<16x32xf32>, vector<32x32xf32>, vector<16x32xf32> -> vector<16x32xf32>
    %74 = vector.broadcast %9 : vector<1x32xf32> to vector<16x32xf32>
    %75 = arith.addf %73, %74 : vector<16x32xf32>
    %76 = arith.addf %0, %75 : vector<16x32xf32>
    %cst_19 = arith.constant dense<0.000000e+00> : vector<16xf32>
    %77 = vector.multi_reduction <add>, %76, %cst_19 [1] : vector<16x32xf32> to vector<16xf32>
    %78 = vector.shape_cast %77 : vector<16xf32> to vector<16x1xf32>
    %cst_20 = arith.constant 3.200000e+01 : f32
    %79 = vector.broadcast %cst_20 : f32 to vector<16x1xf32>
    %80 = arith.divf %78, %79 : vector<16x1xf32>
    %81 = vector.broadcast %80 : vector<16x1xf32> to vector<16x32xf32>
    %82 = arith.subf %76, %81 : vector<16x32xf32>
    %83 = arith.mulf %82, %82 : vector<16x32xf32>
    %cst_21 = arith.constant dense<0.000000e+00> : vector<16xf32>
    %84 = vector.multi_reduction <add>, %83, %cst_21 [1] : vector<16x32xf32> to vector<16xf32>
    %85 = vector.shape_cast %84 : vector<16xf32> to vector<16x1xf32>
    %cst_22 = arith.constant 3.200000e+01 : f32
    %86 = vector.broadcast %cst_22 : f32 to vector<16x1xf32>
    %87 = arith.divf %85, %86 : vector<16x1xf32>
    %88 = vector.broadcast %80 : vector<16x1xf32> to vector<16x32xf32>
    %89 = arith.subf %76, %88 : vector<16x32xf32>
    %cst_23 = arith.constant 9.99999974E-6 : f32
    %90 = vector.broadcast %cst_23 : f32 to vector<16x1xf32>
    %91 = arith.addf %87, %90 : vector<16x1xf32>
    %92 = math.rsqrt %91 : vector<16x1xf32>
    %93 = vector.broadcast %92 : vector<16x1xf32> to vector<16x32xf32>
    %94 = arith.mulf %89, %93 : vector<16x32xf32>
    %95 = vector.broadcast %11 : vector<1x32xf32> to vector<16x32xf32>
    %96 = arith.mulf %94, %95 : vector<16x32xf32>
    %97 = vector.broadcast %12 : vector<1x32xf32> to vector<16x32xf32>
    %98 = arith.addf %96, %97 : vector<16x32xf32>
    %c0_24 = arith.constant 0 : index
    %c0_25 = arith.constant 0 : index
    %99 = vector.load %arg2[%c0_24, %c0_25] : memref<65x64xf32, #tpu.memory_space<vmem>>, vector<65x64xf32>
    %100 = vector.extract_strided_slice %99 {offsets = [0, 0], sizes = [32, 64], strides = [1, 1]} : vector<65x64xf32> to vector<32x64xf32>
    %101 = vector.extract_strided_slice %99 {offsets = [32, 0], sizes = [32, 64], strides = [1, 1]} : vector<65x64xf32> to vector<32x64xf32>
    %102 = vector.extract_strided_slice %99 {offsets = [64, 0], sizes = [1, 64], strides = [1, 1]} : vector<65x64xf32> to vector<1x64xf32>
    %cst_26 = arith.constant dense<0.000000e+00> : vector<16x64xf32>
    %103 = tpu.matmul %98, %100, %cst_26 {dimension_numbers = #tpu.dot_dimension_numbers<[1], [0], [0], [1], [0, 0, 1, 1], [], []>} : vector<16x32xf32>, vector<32x64xf32>, vector<16x64xf32> -> vector<16x64xf32>
    %104 = vector.broadcast %102 : vector<1x64xf32> to vector<16x64xf32>
    %105 = arith.addf %103, %104 : vector<16x64xf32>
    %cst_27 = arith.constant 0.000000e+00 : f32
    %106 = vector.broadcast %cst_27 : f32 to vector<16x64xf32>
    %107 = arith.maximumf %105, %106 : vector<16x64xf32>
    %cst_28 = arith.constant dense<0.000000e+00> : vector<16x32xf32>
    %108 = tpu.matmul %107, %101, %cst_28 {dimension_numbers = #tpu.dot_dimension_numbers<[1], [1], [0], [0], [0, 0, 1, 0], [], []>} : vector<16x64xf32>, vector<32x64xf32>, vector<16x32xf32> -> vector<16x32xf32>
    %109 = vector.broadcast %10 : vector<1x32xf32> to vector<16x32xf32>
    %110 = arith.addf %108, %109 : vector<16x32xf32>
    %111 = arith.addf %98, %110 : vector<16x32xf32>
    %cst_29 = arith.constant dense<0.000000e+00> : vector<16xf32>
    %112 = vector.multi_reduction <add>, %111, %cst_29 [1] : vector<16x32xf32> to vector<16xf32>
    %113 = vector.shape_cast %112 : vector<16xf32> to vector<16x1xf32>
    %cst_30 = arith.constant 3.200000e+01 : f32
    %114 = vector.broadcast %cst_30 : f32 to vector<16x1xf32>
    %115 = arith.divf %113, %114 : vector<16x1xf32>
    %116 = vector.broadcast %115 : vector<16x1xf32> to vector<16x32xf32>
    %117 = arith.subf %111, %116 : vector<16x32xf32>
    %118 = arith.mulf %117, %117 : vector<16x32xf32>
    %cst_31 = arith.constant dense<0.000000e+00> : vector<16xf32>
    %119 = vector.multi_reduction <add>, %118, %cst_31 [1] : vector<16x32xf32> to vector<16xf32>
    %120 = vector.shape_cast %119 : vector<16xf32> to vector<16x1xf32>
    %cst_32 = arith.constant 3.200000e+01 : f32
    %121 = vector.broadcast %cst_32 : f32 to vector<16x1xf32>
    %122 = arith.divf %120, %121 : vector<16x1xf32>
    %123 = vector.broadcast %115 : vector<16x1xf32> to vector<16x32xf32>
    %124 = arith.subf %111, %123 : vector<16x32xf32>
    %cst_33 = arith.constant 9.99999974E-6 : f32
    %125 = vector.broadcast %cst_33 : f32 to vector<16x1xf32>
    %126 = arith.addf %122, %125 : vector<16x1xf32>
    %127 = math.rsqrt %126 : vector<16x1xf32>
    %128 = vector.broadcast %127 : vector<16x1xf32> to vector<16x32xf32>
    %129 = arith.mulf %124, %128 : vector<16x32xf32>
    %130 = vector.broadcast %13 : vector<1x32xf32> to vector<16x32xf32>
    %131 = arith.mulf %129, %130 : vector<16x32xf32>
    %132 = vector.broadcast %14 : vector<1x32xf32> to vector<16x32xf32>
    %133 = arith.addf %131, %132 : vector<16x32xf32>
    %c0_34 = arith.constant 0 : index
    %c0_35 = arith.constant 0 : index
    %134 = vector.load %arg4[%c0_34, %c0_35] : memref<16x32xf32, #tpu.memory_space<vmem>>, vector<16x32xf32>
    tpu.vector_store %arg4[%c0_34, %c0_35], %133 {strides = array<i32>} : memref<16x32xf32, #tpu.memory_space<vmem>>, vector<16x32xf32>,
    return
  }
}

</mosaic_0001>

<llo_original>
// kernel: tpu_custom_call.1
$region0: #{tpu_custom_call.1}
  #allocation0 [shape = 'u32[]', space=smem, size = 0x4, offset = 0x4, fixed_abs, tag = 'smem constant byte address 0x4 - core index']
  #allocation1 [shape = 'u32[144,128]{1,0:T(1,128)}', space=vmem, size = 0x12000, scoped, tag = 'internal scratch']
  %s0 = inlined_call_operand.vmem [shape: f32[32,32], index: 0, kind: input, shape index: {}]
  %s1 = inlined_call_operand.vmem [shape: f32[35,128], index: 1, kind: input, shape index: {}]
  %s2 = inlined_call_operand.vmem [shape: f32[65,64], index: 2, kind: input, shape index: {}]
  %s3 = inlined_call_operand.vmem [shape: f32[16,16], index: 3, kind: input, shape index: {}]
  %s4 = inlined_call_operand.hbm [shape: f32[16,32], index: 4, kind: output, shape index: {}]
  %s5 = sld [smem:[#allocation0]]
  $region26: #{tpu_custom_call.1} parent=0
    _
  %s7 = ssub.s32 1, %s5
  %s8 = scalar_select 0, %s7, %s5
  $region1: #{tpu_custom_call.1} parent=0
    #allocation2 [shape = 'u8[8192]{0}', space=vmem, size = 0x2000, scoped, tag = 'output window, operand 0, single buffered']
    #allocation3 [shape = 's32[1]{0}', space=sflag, size = 0x4, scoped, tag = 'scoped memory for tpu_custom_call.1']
    %9 = vsyncpa [#allocation3], 0
    // Predicated region
    $region2: #{tpu_custom_call.1} parent=1 // pred_check
      _
    $region3: #{tpu_custom_call.1} parent=1 // pred_check_branch
      %11 = sbr.rel (0) target = $region5
    $region4: #{tpu_custom_call.1} parent=1 // pred_region
      _
    $region5: #{tpu_custom_call.1} parent=1 // pred_fallthru
      _
    // Predicated region
    $region6: #{tpu_custom_call.1} parent=1 // pred_check
      _
    $region7: #{tpu_custom_call.1} parent=1 // pred_check_branch
      %13 = sbr.rel (0) target = $region9
    $region8: #{tpu_custom_call.1} parent=1 // pred_region
      _
    $region9: #{tpu_custom_call.1} parent=1 // pred_fallthru
      _
    // Predicated region
    $region10: #{tpu_custom_call.1} parent=1 // pred_check
      _
    $region11: #{tpu_custom_call.1} parent=1 // pred_check_branch
      %15 = sbr.rel (0) target = $region13
    $region12: #{tpu_custom_call.1} parent=1 // pred_region
      _
    $region13: #{tpu_custom_call.1} parent=1 // pred_fallthru
      _
    // Predicated region
    $region14: #{tpu_custom_call.1} parent=1 // pred_check
      _
    $region15: #{tpu_custom_call.1} parent=1 // pred_check_branch
      %17 = sbr.rel (0) target = $region17
    $region16: #{tpu_custom_call.1} parent=1 // pred_region
      _
    $region17: #{tpu_custom_call.1} parent=1 // pred_fallthru
      _
    %v18 = vld [vmem:[%s0] sm:$0xff]
    %v19 = vld [vmem:[%s0 + $0x8] sm:$0xff]
    %v20 = vld [vmem:[%s0 + $0x10] sm:$0xff]
    %v21 = vld [vmem:[%s0 + $0x18] sm:$0xff]
    %v22 = vadd.f32 %v18, %v20
    %v23 = vadd.f32 %v19, %v21
    %v24 = vld [vmem:[%s1] sm:$0xff]
    %v25 = vld [vmem:[%s1 + $0x8] sm:$0xff]
    %v26 = vld [vmem:[%s1 + $0x10] sm:$0xff]
    %v27 = vld [vmem:[%s1 + $0x18] sm:$0xff]
    %v28 = vld [vmem:[%s1 + $0x20] sm:$0x7]
    %v29 = vlaneseq
    %v30 = vshrl.u32 %v29, 7
    %v31 = vsub.s32 0, %v30
    %v32 = vrot.slane %v28, %v31
    %vm33 = vcmask 261120
    %v35 = vsel %vm33, %v22, 0
    %v38 = vsel %vm33, %v23, 0
    %40 = vmatprep.subr.mxu0 0.0
    %41 = vmatpush1.msra.mxu0 %v24
    %42 = vmatprep.subr.mxu0 0.0
    %43 = vmatpush1.msra.mxu0 %v25
    %44 = vmatprep.subr.mxu0 0.0
    %45 = vmatpush1.msra.mxu0 %v26
    %46 = vmatprep.subr.mxu0 0.0
    %47 = vmatpush1.msra.mxu0 %v27
    %48 = vmatprep.subr.mxu0 0.0
    %49 = vmatpush1.msra.mxu0 0.0
    %50 = vmatprep.subr.mxu0 0.0
    %51 = vmatpush1.msra.mxu0 0.0
    %52 = vmatprep.subr.mxu0 0.0
    %53 = vmatpush1.msra.mxu0 0.0
    %54 = vmatprep.subr.mxu0 0.0
    %55 = vmatpush1.msra.mxu0 0.0
    %56 = vmatprep.subr.mxu0 0.0
    %57 = vmatpush1.msra.mxu0 0.0
    %58 = vmatprep.subr.mxu0 0.0
    %59 = vmatpush1.msra.mxu0 0.0
    %60 = vmatprep.subr.mxu0 0.0
    %61 = vmatpush1.msra.mxu0 0.0
    %62 = vmatprep.subr.mxu0 0.0
    %63 = vmatpush1.msra.mxu0 0.0
    %64 = vmatprep.subr.mxu0 0.0
    %65 = vmatpush1.msra.mxu0 0.0
    %66 = vmatprep.subr.mxu0 0.0
    %67 = vmatpush1.msra.mxu0 0.0
    %68 = vmatprep.subr.mxu0 0.0
    %69 = vmatpush1.msra.mxu0 0.0
    %70 = vmatprep.subr.mxu0 0.0
    %71 = vmatpush1.msra.mxu0 0.0
    %72 = vmatprep.subr.mxu0 0.0
    %73 = vmatpush1.msra.mxu0 0.0
    %74 = vmatprep.subr.mxu0 0.0
    %75 = vmatpush1.msra.mxu0 0.0
    %76 = vmatprep.subr.mxu0 0.0
    %77 = vmatpush1.msra.mxu0 0.0
    %78 = vmatprep.subr.mxu0 0.0
    %79 = vmatpush1.msra.mxu0 0.0
    %80 = vmatprep.subr.mxu0 0.0
    %81 = vmatpush1.msra.mxu0 0.0
    %82 = vmatprep.subr.mxu0 0.0
    %83 = vmatpush1.msra.mxu0 0.0
    %84 = vmatprep.subr.mxu0 0.0
    %85 = vmatpush1.msra.mxu0 0.0
    %86 = vmatprep.subr.mxu0 0.0
    %87 = vmatpush1.msra.mxu0 0.0
    %88 = vmatprep.subr.mxu0 0.0
    %89 = vmatpush1.msra.mxu0 0.0
    %90 = vmatprep.subr.mxu0 0.0
    %91 = vmatpush1.msra.mxu0 0.0
    %92 = vmatprep.subr.mxu0 0.0
    %93 = vmatpush1.msra.mxu0 0.0
    %94 = vmatprep.subr.mxu0 0.0
    %95 = vmatpush1.msra.mxu0 0.0
    %96 = vmatprep.subr.mxu0 0.0
    %97 = vmatpush1.msra.mxu0 0.0
    %98 = vmatprep.subr.mxu0 0.0
    %99 = vmatpush1.msra.mxu0 0.0
    %100 = vmatprep.subr.mxu0 0.0
    %101 = vmatpush1.msra.mxu0 0.0
    %102 = vmatprep.subr.mxu0 0.0
    %103 = vmatpush1.msra.mxu0 0.0
    %104 = vmatprep.mubr.f32.mxu0 0.0
    %105 = vmatmul.mubr.f32.gmra.mrb[0].mxu0 %v35
    %v106 = vpop.f32.mrb[0].mxu0
    %v107 = vadd.f32 %v32, %v106
    %v108 = vpop.f32.mrb[0].mxu0
    %109 = vmatprep.mubr.f32.mxu0 0.0
    %110 = vmatmul.mubr.f32.gmra.mrb[0].mxu0 %v38
    %v111 = vpop.f32.mrb[0].mxu0
    %v112 = vadd.f32 %v32, %v111
    %v113 = vpop.f32.mrb[0].mxu0
    %114 = vdwg.mxu0
    %119 = vrot.lane.b32.xlu0 %v24, 64
    %v120 = vpop.permute.xlu0 %119
    %121 = vrot.lane.b32.xlu0 %v25, 64
    %v122 = vpop.permute.xlu0 %121
    %123 = vrot.lane.b32.xlu0 %v26, 64
    %v124 = vpop.permute.xlu0 %123
    %125 = vrot.lane.b32.xlu0 %v27, 64
    %v126 = vpop.permute.xlu0 %125
    %132 = vrot.lane.b32.xlu0 %v32, 64
    %v133 = vpop.permute.xlu0 %132
    %v136 = vsel %vm33, %v18, 0
    %v139 = vsel %vm33, %v19, 0
    %141 = vmatprep.subr.mxu0 0.0
    %142 = vmatpush1.msra.mxu0 %v120
    %143 = vmatprep.subr.mxu0 0.0
    %144 = vmatpush1.msra.mxu0 %v122
    %145 = vmatprep.subr.mxu0 0.0
    %146 = vmatpush1.msra.mxu0 %v124
    %147 = vmatprep.subr.mxu0 0.0
    %148 = vmatpush1.msra.mxu0 %v126
    %149 = vmatprep.subr.mxu0 0.0
    %150 = vmatpush1.msra.mxu0 0.0
    %151 = vmatprep.subr.mxu0 0.0
    %152 = vmatpush1.msra.mxu0 0.0
    %153 = vmatprep.subr.mxu0 0.0
    %154 = vmatpush1.msra.mxu0 0.0
    %155 = vmatprep.subr.mxu0 0.0
    %156 = vmatpush1.msra.mxu0 0.0
    %157 = vmatprep.subr.mxu0 0.0
    %158 = vmatpush1.msra.mxu0 0.0
    %159 = vmatprep.subr.mxu0 0.0
    %160 = vmatpush1.msra.mxu0 0.0
    %161 = vmatprep.subr.mxu0 0.0
    %162 = vmatpush1.msra.mxu0 0.0
    %163 = vmatprep.subr.mxu0 0.0
    %164 = vmatpush1.msra.mxu0 0.0
    %165 = vmatprep.subr.mxu0 0.0
    %166 = vmatpush1.msra.mxu0 0.0
    %167 = vmatprep.subr.mxu0 0.0
    %168 = vmatpush1.msra.mxu0 0.0
    %169 = vmatprep.subr.mxu0 0.0
    %170 = vmatpush1.msra.mxu0 0.0
    %171 = vmatprep.subr.mxu0 0.0
    %172 = vmatpush1.msra.mxu0 0.0
    %173 = vmatprep.subr.mxu0 0.0
    %174 = vmatpush1.msra.mxu0 0.0
    %175 = vmatprep.subr.mxu0 0.0
    %176 = vmatpush1.msra.mxu0 0.0
    %177 = vmatprep.subr.mxu0 0.0
    %178 = vmatpush1.msra.mxu0 0.0
    %179 = vmatprep.subr.mxu0 0.0
    %180 = vmatpush1.msra.mxu0 0.0
    %181 = vmatprep.subr.mxu0 0.0
    %182 = vmatpush1.msra.mxu0 0.0
    %183 = vmatprep.subr.mxu0 0.0
    %184 = vmatpush1.msra.mxu0 0.0
    %185 = vmatprep.subr.mxu0 0.0
    %186 = vmatpush1.msra.mxu0 0.0
    %187 = vmatprep.subr.mxu0 0.0
    %188 = vmatpush1.msra.mxu0 0.0
    %189 = vmatprep.subr.mxu0 0.0
    %190 = vmatpush1.msra.mxu0 0.0
    %191 = vmatprep.subr.mxu0 0.0
    %192 = vmatpush1.msra.mxu0 0.0
    %193 = vmatprep.subr.mxu0 0.0
    %194 = vmatpush1.msra.mxu0 0.0
    %195 = vmatprep.subr.mxu0 0.0
    %196 = vmatpush1.msra.mxu0 0.0
    %197 = vmatprep.subr.mxu0 0.0
    %198 = vmatpush1.msra.mxu0 0.0
    %199 = vmatprep.subr.mxu0 0.0
    %200 = vmatpush1.msra.mxu0 0.0
    %201 = vmatprep.subr.mxu0 0.0
    %202 = vmatpush1.msra.mxu0 0.0
    %203 = vmatprep.subr.mxu0 0.0
    %204 = vmatpush1.msra.mxu0 0.0
    %205 = vmatprep.mubr.f32.mxu0 0.0
    %206 = vmatmul.mubr.f32.gmra.mrb[0].mxu0 %v136
    %v207 = vpop.f32.mrb[0].mxu0
    %v208 = vadd.f32 %v133, %v207
    %v209 = vpop.f32.mrb[0].mxu0
    %210 = vmatprep.mubr.f32.mxu0 0.0
    %211 = vmatmul.mubr.f32.gmra.mrb[0].mxu0 %v139
    %v212 = vpop.f32.mrb[0].mxu0
    %v213 = vadd.f32 %v133, %v212
    %v214 = vpop.f32.mrb[0].mxu0
    %215 = vdwg.mxu0
    %218 = vrot.lane.b32.xlu0 %v107, 96
    %v219 = vpop.permute.xlu0 %218
    %220 = vrot.lane.b32.xlu0 %v112, 96
    %v221 = vpop.permute.xlu0 %220
    %vm222 = vcmask 64512
    %v223 = vsel %vm222, %v107, 0
    %v225 = vsel %vm222, %v112, 0
    %v227 = vsel %vm222, %v219, 0
    %v229 = vsel %vm222, %v221, 0
    %231 = vmatprep.subr.mxu0 0.0
    %232 = vmatpush1.xpose.msra.mxu0 %v227
    %233 = vmatprep.subr.mxu0 0.0
    %234 = vmatpush1.xpose.msra.mxu0 %v229
    %235 = vmatprep.subr.mxu0 0.0
    %236 = vmatpush1.xpose.msra.mxu0 0.0
    %237 = vmatprep.subr.mxu0 0.0
    %238 = vmatpush1.xpose.msra.mxu0 0.0
    %239 = vmatprep.subr.mxu0 0.0
    %240 = vmatpush1.xpose.msra.mxu0 0.0
    %241 = vmatprep.subr.mxu0 0.0
    %242 = vmatpush1.xpose.msra.mxu0 0.0
    %243 = vmatprep.subr.mxu0 0.0
    %244 = vmatpush1.xpose.msra.mxu0 0.0
    %245 = vmatprep.subr.mxu0 0.0
    %246 = vmatpush1.xpose.msra.mxu0 0.0
    %247 = vmatprep.subr.mxu0 0.0
    %248 = vmatpush1.xpose.msra.mxu0 0.0
    %249 = vmatprep.subr.mxu0 0.0
    %250 = vmatpush1.xpose.msra.mxu0 0.0
    %251 = vmatprep.subr.mxu0 0.0
    %252 = vmatpush1.xpose.msra.mxu0 0.0
    %253 = vmatprep.subr.mxu0 0.0
    %254 = vmatpush1.xpose.msra.mxu0 0.0
    %255 = vmatprep.subr.mxu0 0.0
    %256 = vmatpush1.xpose.msra.mxu0 0.0
    %257 = vmatprep.subr.mxu0 0.0
    %258 = vmatpush1.xpose.msra.mxu0 0.0
    %259 = vmatprep.subr.mxu0 0.0
    %260 = vmatpush1.xpose.msra.mxu0 0.0
    %261 = vmatprep.subr.mxu0 0.0
    %262 = vmatpush1.xpose.msra.mxu0 0.0
    %263 = vmatprep.subr.mxu0 0.0
    %264 = vmatpush1.xpose.msra.mxu0 0.0
    %265 = vmatprep.subr.mxu0 0.0
    %266 = vmatpush1.xpose.msra.mxu0 0.0
    %267 = vmatprep.subr.mxu0 0.0
    %268 = vmatpush1.xpose.msra.mxu0 0.0
    %269 = vmatprep.subr.mxu0 0.0
    %270 = vmatpush1.xpose.msra.mxu0 0.0
    %271 = vmatprep.subr.mxu0 0.0
    %272 = vmatpush1.xpose.msra.mxu0 0.0
    %273 = vmatprep.subr.mxu0 0.0
    %274 = vmatpush1.xpose.msra.mxu0 0.0
    %275 = vmatprep.subr.mxu0 0.0
    %276 = vmatpush1.xpose.msra.mxu0 0.0
    %277 = vmatprep.subr.mxu0 0.0
    %278 = vmatpush1.xpose.msra.mxu0 0.0
    %279 = vmatprep.subr.mxu0 0.0
    %280 = vmatpush1.xpose.msra.mxu0 0.0
    %281 = vmatprep.subr.mxu0 0.0
    %282 = vmatpush1.xpose.msra.mxu0 0.0
    %283 = vmatprep.subr.mxu0 0.0
    %284 = vmatpush1.xpose.msra.mxu0 0.0
    %285 = vmatprep.subr.mxu0 0.0
    %286 = vmatpush1.xpose.msra.mxu0 0.0
    %287 = vmatprep.subr.mxu0 0.0
    %288 = vmatpush1.xpose.msra.mxu0 0.0
    %289 = vmatprep.subr.mxu0 0.0
    %290 = vmatpush1.xpose.msra.mxu0 0.0
    %291 = vmatprep.subr.mxu0 0.0
    %292 = vmatpush1.xpose.msra.mxu0 0.0
    %293 = vmatprep.subr.mxu0 0.0
    %294 = vmatpush1.xpose.msra.mxu0 0.0
    %295 = vmatprep.mubr.f32.mxu0 0.0
    %296 = vmatmul.mubr.f32.gmra.mrb[0].mxu0 %v223
    %v297 = vpop.f32.mrb[0].mxu0
    %v298 = vadd.f32 0.0, %v297
    %v299 = vpop.f32.mrb[0].mxu0
    %300 = vmatprep.mubr.f32.mxu0 0.0
    %301 = vmatmul.mubr.f32.gmra.mrb[0].mxu0 %v225
    %v302 = vpop.f32.mrb[0].mxu0
    %v303 = vadd.f32 0.0, %v302
    %v304 = vpop.f32.mrb[0].mxu0
    %305 = vdwg.mxu0
    %306 = vrot.lane.b32.xlu0 %v107, 120
    %v307 = vpop.permute.xlu0 %306
    %308 = vrot.lane.b32.xlu0 %v112, 120
    %v309 = vpop.permute.xlu0 %308
    %310 = vrot.lane.b32.xlu0 %v107, 88
    %v311 = vpop.permute.xlu0 %310
    %312 = vrot.lane.b32.xlu0 %v112, 88
    %v313 = vpop.permute.xlu0 %312
    %v314 = vsel %vm222, %v307, 0
    %v316 = vsel %vm222, %v309, 0
    %v318 = vsel %vm222, %v311, 0
    %v320 = vsel %vm222, %v313, 0
    %322 = vmatprep.subr.mxu0 0.0
    %323 = vmatpush1.xpose.msra.mxu0 %v318
    %324 = vmatprep.subr.mxu0 0.0
    %325 = vmatpush1.xpose.msra.mxu0 %v320
    %326 = vmatprep.subr.mxu0 0.0
    %327 = vmatpush1.xpose.msra.mxu0 0.0
    %328 = vmatprep.subr.mxu0 0.0
    %329 = vmatpush1.xpose.msra.mxu0 0.0
    %330 = vmatprep.subr.mxu0 0.0
    %331 = vmatpush1.xpose.msra.mxu0 0.0
    %332 = vmatprep.subr.mxu0 0.0
    %333 = vmatpush1.xpose.msra.mxu0 0.0
    %334 = vmatprep.subr.mxu0 0.0
    %335 = vmatpush1.xpose.msra.mxu0 0.0
    %336 = vmatprep.subr.mxu0 0.0
    %337 = vmatpush1.xpose.msra.mxu0 0.0
    %338 = vmatprep.subr.mxu0 0.0
    %339 = vmatpush1.xpose.msra.mxu0 0.0
    %340 = vmatprep.subr.mxu0 0.0
    %341 = vmatpush1.xpose.msra.mxu0 0.0
    %342 = vmatprep.subr.mxu0 0.0
    %343 = vmatpush1.xpose.msra.mxu0 0.0
    %344 = vmatprep.subr.mxu0 0.0
    %345 = vmatpush1.xpose.msra.mxu0 0.0
    %346 = vmatprep.subr.mxu0 0.0
    %347 = vmatpush1.xpose.msra.mxu0 0.0
    %348 = vmatprep.subr.mxu0 0.0
    %349 = vmatpush1.xpose.msra.mxu0 0.0
    %350 = vmatprep.subr.mxu0 0.0
    %351 = vmatpush1.xpose.msra.mxu0 0.0
    %352 = vmatprep.subr.mxu0 0.0
    %353 = vmatpush1.xpose.msra.mxu0 0.0
    %354 = vmatprep.subr.mxu0 0.0
    %355 = vmatpush1.xpose.msra.mxu0 0.0
    %356 = vmatprep.subr.mxu0 0.0
    %357 = vmatpush1.xpose.msra.mxu0 0.0
    %358 = vmatprep.subr.mxu0 0.0
    %359 = vmatpush1.xpose.msra.mxu0 0.0
    %360 = vmatprep.subr.mxu0 0.0
    %361 = vmatpush1.xpose.msra.mxu0 0.0
    %362 = vmatprep.subr.mxu0 0.0
    %363 = vmatpush1.xpose.msra.mxu0 0.0
    %364 = vmatprep.subr.mxu0 0.0
    %365 = vmatpush1.xpose.msra.mxu0 0.0
    %366 = vmatprep.subr.mxu0 0.0
    %367 = vmatpush1.xpose.msra.mxu0 0.0
    %368 = vmatprep.subr.mxu0 0.0
    %369 = vmatpush1.xpose.msra.mxu0 0.0
    %370 = vmatprep.subr.mxu0 0.0
    %371 = vmatpush1.xpose.msra.mxu0 0.0
    %372 = vmatprep.subr.mxu0 0.0
    %373 = vmatpush1.xpose.msra.mxu0 0.0
    %374 = vmatprep.subr.mxu0 0.0
    %375 = vmatpush1.xpose.msra.mxu0 0.0
    %376 = vmatprep.subr.mxu0 0.0
    %377 = vmatpush1.xpose.msra.mxu0 0.0
    %378 = vmatprep.subr.mxu0 0.0
    %379 = vmatpush1.xpose.msra.mxu0 0.0
    %380 = vmatprep.subr.mxu0 0.0
    %381 = vmatpush1.xpose.msra.mxu0 0.0
    %382 = vmatprep.subr.mxu0 0.0
    %383 = vmatpush1.xpose.msra.mxu0 0.0
    %384 = vmatprep.subr.mxu0 0.0
    %385 = vmatpush1.xpose.msra.mxu0 0.0
    %386 = vmatprep.mubr.f32.mxu0 0.0
    %387 = vmatmul.mubr.f32.gmra.mrb[0].mxu0 %v314
    %v388 = vpop.f32.mrb[0].mxu0
    %v389 = vadd.f32 0.0, %v388
    %v390 = vpop.f32.mrb[0].mxu0
    %391 = vmatprep.mubr.f32.mxu0 0.0
    %392 = vmatmul.mubr.f32.gmra.mrb[0].mxu0 %v316
    %v393 = vpop.f32.mrb[0].mxu0
    %v394 = vadd.f32 0.0, %v393
    %v395 = vpop.f32.mrb[0].mxu0
    %396 = vdwg.mxu0
    %397 = vrot.lane.b32.xlu0 %v107, 112
    %v398 = vpop.permute.xlu0 %397
    %399 = vrot.lane.b32.xlu0 %v112, 112
    %v400 = vpop.permute.xlu0 %399
    %401 = vrot.lane.b32.xlu0 %v107, 80
    %v402 = vpop.permute.xlu0 %401
    %403 = vrot.lane.b32.xlu0 %v112, 80
    %v404 = vpop.permute.xlu0 %403
    %v405 = vsel %vm222, %v398, 0
    %v407 = vsel %vm222, %v400, 0
    %v409 = vsel %vm222, %v402, 0
    %v411 = vsel %vm222, %v404, 0
    %413 = vmatprep.subr.mxu0 0.0
    %414 = vmatpush1.xpose.msra.mxu0 %v409
    %415 = vmatprep.subr.mxu0 0.0
    %416 = vmatpush1.xpose.msra.mxu0 %v411
    %417 = vmatprep.subr.mxu0 0.0
    %418 = vmatpush1.xpose.msra.mxu0 0.0
    %419 = vmatprep.subr.mxu0 0.0
    %420 = vmatpush1.xpose.msra.mxu0 0.0
    %421 = vmatprep.subr.mxu0 0.0
    %422 = vmatpush1.xpose.msra.mxu0 0.0
    %423 = vmatprep.subr.mxu0 0.0
    %424 = vmatpush1.xpose.msra.mxu0 0.0
    %425 = vmatprep.subr.mxu0 0.0
    %426 = vmatpush1.xpose.msra.mxu0 0.0
    %427 = vmatprep.subr.mxu0 0.0
    %428 = vmatpush1.xpose.msra.mxu0 0.0
    %429 = vmatprep.subr.mxu0 0.0
    %430 = vmatpush1.xpose.msra.mxu0 0.0
    %431 = vmatprep.subr.mxu0 0.0
    %432 = vmatpush1.xpose.msra.mxu0 0.0
    %433 = vmatprep.subr.mxu0 0.0
    %434 = vmatpush1.xpose.msra.mxu0 0.0
    %435 = vmatprep.subr.mxu0 0.0
    %436 = vmatpush1.xpose.msra.mxu0 0.0
    %437 = vmatprep.subr.mxu0 0.0
    %438 = vmatpush1.xpose.msra.mxu0 0.0
    %439 = vmatprep.subr.mxu0 0.0
    %440 = vmatpush1.xpose.msra.mxu0 0.0
    %441 = vmatprep.subr.mxu0 0.0
    %442 = vmatpush1.xpose.msra.mxu0 0.0
    %443 = vmatprep.subr.mxu0 0.0
    %444 = vmatpush1.xpose.msra.mxu0 0.0
    %445 = vmatprep.subr.mxu0 0.0
    %446 = vmatpush1.xpose.msra.mxu0 0.0
    %447 = vmatprep.subr.mxu0 0.0
    %448 = vmatpush1.xpose.msra.mxu0 0.0
    %449 = vmatprep.subr.mxu0 0.0
    %450 = vmatpush1.xpose.msra.mxu0 0.0
    %451 = vmatprep.subr.mxu0 0.0
    %452 = vmatpush1.xpose.msra.mxu0 0.0
    %453 = vmatprep.subr.mxu0 0.0
    %454 = vmatpush1.xpose.msra.mxu0 0.0
    %455 = vmatprep.subr.mxu0 0.0
    %456 = vmatpush1.xpose.msra.mxu0 0.0
    %457 = vmatprep.subr.mxu0 0.0
    %458 = vmatpush1.xpose.msra.mxu0 0.0
    %459 = vmatprep.subr.mxu0 0.0
    %460 = vmatpush1.xpose.msra.mxu0 0.0
    %461 = vmatprep.subr.mxu0 0.0
    %462 = vmatpush1.xpose.msra.mxu0 0.0
    %463 = vmatprep.subr.mxu0 0.0
    %464 = vmatpush1.xpose.msra.mxu0 0.0
    %465 = vmatprep.subr.mxu0 0.0
    %466 = vmatpush1.xpose.msra.mxu0 0.0
    %467 = vmatprep.subr.mxu0 0.0
    %468 = vmatpush1.xpose.msra.mxu0 0.0
    %469 = vmatprep.subr.mxu0 0.0
    %470 = vmatpush1.xpose.msra.mxu0 0.0
    %471 = vmatprep.subr.mxu0 0.0
    %472 = vmatpush1.xpose.msra.mxu0 0.0
    %473 = vmatprep.subr.mxu0 0.0
    %474 = vmatpush1.xpose.msra.mxu0 0.0
    %475 = vmatprep.subr.mxu0 0.0
    %476 = vmatpush1.xpose.msra.mxu0 0.0
    %477 = vmatprep.mubr.f32.mxu0 0.0
    %478 = vmatmul.mubr.f32.gmra.mrb[0].mxu0 %v405
    %v479 = vpop.f32.mrb[0].mxu0
    %v480 = vadd.f32 0.0, %v479
    %v481 = vpop.f32.mrb[0].mxu0
    %482 = vmatprep.mubr.f32.mxu0 0.0
    %483 = vmatmul.mubr.f32.gmra.mrb[0].mxu0 %v407
    %v484 = vpop.f32.mrb[0].mxu0
    %v485 = vadd.f32 0.0, %v484
    %v486 = vpop.f32.mrb[0].mxu0
    %487 = vdwg.mxu0
    %488 = vrot.lane.b32.xlu0 %v107, 104
    %v489 = vpop.permute.xlu0 %488
    %490 = vrot.lane.b32.xlu0 %v112, 104
    %v491 = vpop.permute.xlu0 %490
    %492 = vrot.lane.b32.xlu0 %v107, 72
    %v493 = vpop.permute.xlu0 %492
    %494 = vrot.lane.b32.xlu0 %v112, 72
    %v495 = vpop.permute.xlu0 %494
    %v496 = vsel %vm222, %v489, 0
    %v498 = vsel %vm222, %v491, 0
    %v500 = vsel %vm222, %v493, 0
    %v502 = vsel %vm222, %v495, 0
    %504 = vmatprep.subr.mxu0 0.0
    %505 = vmatpush1.xpose.msra.mxu0 %v500
    %506 = vmatprep.subr.mxu0 0.0
    %507 = vmatpush1.xpose.msra.mxu0 %v502
    %508 = vmatprep.subr.mxu0 0.0
    %509 = vmatpush1.xpose.msra.mxu0 0.0
    %510 = vmatprep.subr.mxu0 0.0
    %511 = vmatpush1.xpose.msra.mxu0 0.0
    %512 = vmatprep.subr.mxu0 0.0
    %513 = vmatpush1.xpose.msra.mxu0 0.0
    %514 = vmatprep.subr.mxu0 0.0
    %515 = vmatpush1.xpose.msra.mxu0 0.0
    %516 = vmatprep.subr.mxu0 0.0
    %517 = vmatpush1.xpose.msra.mxu0 0.0
    %518 = vmatprep.subr.mxu0 0.0
    %519 = vmatpush1.xpose.msra.mxu0 0.0
    %520 = vmatprep.subr.mxu0 0.0
    %521 = vmatpush1.xpose.msra.mxu0 0.0
    %522 = vmatprep.subr.mxu0 0.0
    %523 = vmatpush1.xpose.msra.mxu0 0.0
    %524 = vmatprep.subr.mxu0 0.0
    %525 = vmatpush1.xpose.msra.mxu0 0.0
    %526 = vmatprep.subr.mxu0 0.0
    %527 = vmatpush1.xpose.msra.mxu0 0.0
    %528 = vmatprep.subr.mxu0 0.0
    %529 = vmatpush1.xpose.msra.mxu0 0.0
    %530 = vmatprep.subr.mxu0 0.0
    %531 = vmatpush1.xpose.msra.mxu0 0.0
    %532 = vmatprep.subr.mxu0 0.0
    %533 = vmatpush1.xpose.msra.mxu0 0.0
    %534 = vmatprep.subr.mxu0 0.0
    %535 = vmatpush1.xpose.msra.mxu0 0.0
    %536 = vmatprep.subr.mxu0 0.0
    %537 = vmatpush1.xpose.msra.mxu0 0.0
    %538 = vmatprep.subr.mxu0 0.0
    %539 = vmatpush1.xpose.msra.mxu0 0.0
    %540 = vmatprep.subr.mxu0 0.0
    %541 = vmatpush1.xpose.msra.mxu0 0.0
    %542 = vmatprep.subr.mxu0 0.0
    %543 = vmatpush1.xpose.msra.mxu0 0.0
    %544 = vmatprep.subr.mxu0 0.0
    %545 = vmatpush1.xpose.msra.mxu0 0.0
    %546 = vmatprep.subr.mxu0 0.0
    %547 = vmatpush1.xpose.msra.mxu0 0.0
    %548 = vmatprep.subr.mxu0 0.0
    %549 = vmatpush1.xpose.msra.mxu0 0.0
    %550 = vmatprep.subr.mxu0 0.0
    %551 = vmatpush1.xpose.msra.mxu0 0.0
    %552 = vmatprep.subr.mxu0 0.0
    %553 = vmatpush1.xpose.msra.mxu0 0.0
    %554 = vmatprep.subr.mxu0 0.0
    %555 = vmatpush1.xpose.msra.mxu0 0.0
    %556 = vmatprep.subr.mxu0 0.0
    %557 = vmatpush1.xpose.msra.mxu0 0.0
    %558 = vmatprep.subr.mxu0 0.0
    %559 = vmatpush1.xpose.msra.mxu0 0.0
    %560 = vmatprep.subr.mxu0 0.0
    %561 = vmatpush1.xpose.msra.mxu0 0.0
    %562 = vmatprep.subr.mxu0 0.0
    %563 = vmatpush1.xpose.msra.mxu0 0.0
    %564 = vmatprep.subr.mxu0 0.0
    %565 = vmatpush1.xpose.msra.mxu0 0.0
    %566 = vmatprep.subr.mxu0 0.0
    %567 = vmatpush1.xpose.msra.mxu0 0.0
    %568 = vmatprep.mubr.f32.mxu0 0.0
    %569 = vmatmul.mubr.f32.gmra.mrb[0].mxu0 %v496
    %v570 = vpop.f32.mrb[0].mxu0
    %v571 = vadd.f32 0.0, %v570
    %v572 = vpop.f32.mrb[0].mxu0
    %573 = vmatprep.mubr.f32.mxu0 0.0
    %574 = vmatmul.mubr.f32.gmra.mrb[0].mxu0 %v498
    %v575 = vpop.f32.mrb[0].mxu0
    %v576 = vadd.f32 0.0, %v575
    %v577 = vpop.f32.mrb[0].mxu0
    %578 = vdwg.mxu0
    %v579 = vld [vmem:[%s3] sm:$0xff]
    %v580 = vld [vmem:[%s3 + $0x8] sm:$0xff]
    %v581 = vadd.f32 %v298, %v579
    %v582 = vadd.f32 %v303, %v580
    %v583 = vadd.f32 %v389, %v579
    %v584 = vadd.f32 %v394, %v580
    %v585 = vadd.f32 %v480, %v579
    %v586 = vadd.f32 %v485, %v580
    %v587 = vadd.f32 %v571, %v579
    %v588 = vadd.f32 %v576, %v580
    %vm589 = vcmask 130048
    %v590 = vsel %vm589, %v581, -inf
    %591 = vmax.xlane.f32.xlu0 %v590
    %v592 = vpop.xlane.xlu0 %591
    %v593 = vsel %vm589, %v582, -inf
    %594 = vmax.xlane.f32.xlu0 %v593
    %v595 = vpop.xlane.xlu0 %594
    %v596 = vsel %vm589, %v583, -inf
    %597 = vmax.xlane.f32.xlu0 %v596
    %v598 = vpop.xlane.xlu0 %597
    %v599 = vsel %vm589, %v584, -inf
    %600 = vmax.xlane.f32.xlu0 %v599
    %v601 = vpop.xlane.xlu0 %600
    %v602 = vsel %vm589, %v585, -inf
    %603 = vmax.xlane.f32.xlu0 %v602
    %v604 = vpop.xlane.xlu0 %603
    %v605 = vsel %vm589, %v586, -inf
    %606 = vmax.xlane.f32.xlu0 %v605
    %v607 = vpop.xlane.xlu0 %606
    %v608 = vsel %vm589, %v587, -inf
    %609 = vmax.xlane.f32.xlu0 %v608
    %v610 = vpop.xlane.xlu0 %609
    %v611 = vsel %vm589, %v588, -inf
    %612 = vmax.xlane.f32.xlu0 %v611
    %v613 = vpop.xlane.xlu0 %612
    %v614 = vsub.f32 %v581, %v592
    %v615 = vsub.f32 %v582, %v595
    %v616 = vsub.f32 %v583, %v598
    %v617 = vsub.f32 %v584, %v601
    %v618 = vsub.f32 %v585, %v604
    %v619 = vsub.f32 %v586, %v607
    %v620 = vsub.f32 %v587, %v610
    %v621 = vsub.f32 %v588, %v613
    %v622 = vmul.f32 %v614, 1.442695
    %v623 = vpow.pop %v622
    %v624 = vmul.f32 %v615, 1.442695
    %v625 = vpow.pop %v624
    %v626 = vmul.f32 %v616, 1.442695
    %v627 = vpow.pop %v626
    %v628 = vmul.f32 %v617, 1.442695
    %v629 = vpow.pop %v628
    %v630 = vmul.f32 %v618, 1.442695
    %v631 = vpow.pop %v630
    %v632 = vmul.f32 %v619, 1.442695
    %v633 = vpow.pop %v632
    %v634 = vmul.f32 %v620, 1.442695
    %v635 = vpow.pop %v634
    %v636 = vmul.f32 %v621, 1.442695
    %v637 = vpow.pop %v636
    %v638 = vsel %vm589, %v623, 0.0
    %639 = vadd.xlane.f32.xlu0 %v638
    %v640 = vpop.xlane.xlu0 %639
    %v641 = vsel %vm589, %v625, 0.0
    %642 = vadd.xlane.f32.xlu0 %v641
    %v643 = vpop.xlane.xlu0 %642
    %v644 = vsel %vm589, %v627, 0.0
    %645 = vadd.xlane.f32.xlu0 %v644
    %v646 = vpop.xlane.xlu0 %645
    %v647 = vsel %vm589, %v629, 0.0
    %648 = vadd.xlane.f32.xlu0 %v647
    %v649 = vpop.xlane.xlu0 %648
    %v650 = vsel %vm589, %v631, 0.0
    %651 = vadd.xlane.f32.xlu0 %v650
    %v652 = vpop.xlane.xlu0 %651
    %v653 = vsel %vm589, %v633, 0.0
    %654 = vadd.xlane.f32.xlu0 %v653
    %v655 = vpop.xlane.xlu0 %654
    %v656 = vsel %vm589, %v635, 0.0
    %657 = vadd.xlane.f32.xlu0 %v656
    %v658 = vpop.xlane.xlu0 %657
    %v659 = vsel %vm589, %v637, 0.0
    %660 = vadd.xlane.f32.xlu0 %v659
    %v661 = vpop.xlane.xlu0 %660
    %v662 = vrcp.pop %v640
    %v663 = vrcp.pop %v643
    %v664 = vrcp.pop %v646
    %v665 = vrcp.pop %v649
    %v666 = vrcp.pop %v652
    %v667 = vrcp.pop %v655
    %v668 = vrcp.pop %v658
    %v669 = vrcp.pop %v661
    %v670 = vmul.f32 %v640, %v662
    %v671 = vmul.f32 %v643, %v663
    %v672 = vmul.f32 %v646, %v664
    %v673 = vmul.f32 %v649, %v665
    %v674 = vmul.f32 %v652, %v666
    %v675 = vmul.f32 %v655, %v667
    %v676 = vmul.f32 %v658, %v668
    %v677 = vmul.f32 %v661, %v669
    %v678 = vsub.f32 2.0, %v670
    %v679 = vsub.f32 2.0, %v671
    %v680 = vsub.f32 2.0, %v672
    %v681 = vsub.f32 2.0, %v673
    %v682 = vsub.f32 2.0, %v674
    %v683 = vsub.f32 2.0, %v675
    %v684 = vsub.f32 2.0, %v676
    %v685 = vsub.f32 2.0, %v677
    %v686 = vmul.f32 %v662, %v678
    %v687 = vmul.f32 %v663, %v679
    %v688 = vmul.f32 %v664, %v680
    %v689 = vmul.f32 %v665, %v681
    %v690 = vmul.f32 %v666, %v682
    %v691 = vmul.f32 %v667, %v683
    %v692 = vmul.f32 %v668, %v684
    %v693 = vmul.f32 %v669, %v685
    %v694 = vmul.f32 %v623, %v686
    %v695 = vmul.f32 %v625, %v687
    %v696 = vmul.f32 %v627, %v688
    %v697 = vmul.f32 %v629, %v689
    %v698 = vmul.f32 %v631, %v690
    %v699 = vmul.f32 %v633, %v691
    %v700 = vmul.f32 %v635, %v692
    %v701 = vmul.f32 %v637, %v693
    %v703 = vsel %vm589, %v694, 0
    %v706 = vsel %vm589, %v695, 0
    %708 = vmatprep.subr.mxu0 0.0
    %709 = vmatpush1.msra.mxu0 %v208
    %710 = vmatprep.subr.mxu0 0.0
    %711 = vmatpush1.msra.mxu0 %v213
    %712 = vmatprep.subr.mxu0 0.0
    %713 = vmatpush1.msra.mxu0 0.0
    %714 = vmatprep.subr.mxu0 0.0
    %715 = vmatpush1.msra.mxu0 0.0
    %716 = vmatprep.subr.mxu0 0.0
    %717 = vmatpush1.msra.mxu0 0.0
    %718 = vmatprep.subr.mxu0 0.0
    %719 = vmatpush1.msra.mxu0 0.0
    %720 = vmatprep.subr.mxu0 0.0
    %721 = vmatpush1.msra.mxu0 0.0
    %722 = vmatprep.subr.mxu0 0.0
    %723 = vmatpush1.msra.mxu0 0.0
    %724 = vmatprep.subr.mxu0 0.0
    %725 = vmatpush1.msra.mxu0 0.0
    %726 = vmatprep.subr.mxu0 0.0
    %727 = vmatpush1.msra.mxu0 0.0
    %728 = vmatprep.subr.mxu0 0.0
    %729 = vmatpush1.msra.mxu0 0.0
    %730 = vmatprep.subr.mxu0 0.0
    %731 = vmatpush1.msra.mxu0 0.0
    %732 = vmatprep.subr.mxu0 0.0
    %733 = vmatpush1.msra.mxu0 0.0
    %734 = vmatprep.subr.mxu0 0.0
    %735 = vmatpush1.msra.mxu0 0.0
    %736 = vmatprep.subr.mxu0 0.0
    %737 = vmatpush1.msra.mxu0 0.0
    %738 = vmatprep.subr.mxu0 0.0
    %739 = vmatpush1.msra.mxu0 0.0
    %740 = vmatprep.subr.mxu0 0.0
    %741 = vmatpush1.msra.mxu0 0.0
    %742 = vmatprep.subr.mxu0 0.0
    %743 = vmatpush1.msra.mxu0 0.0
    %744 = vmatprep.subr.mxu0 0.0
    %745 = vmatpush1.msra.mxu0 0.0
    %746 = vmatprep.subr.mxu0 0.0
    %747 = vmatpush1.msra.mxu0 0.0
    %748 = vmatprep.subr.mxu0 0.0
    %749 = vmatpush1.msra.mxu0 0.0
    %750 = vmatprep.subr.mxu0 0.0
    %751 = vmatpush1.msra.mxu0 0.0
    %752 = vmatprep.subr.mxu0 0.0
    %753 = vmatpush1.msra.mxu0 0.0
    %754 = vmatprep.subr.mxu0 0.0
    %755 = vmatpush1.msra.mxu0 0.0
    %756 = vmatprep.subr.mxu0 0.0
    %757 = vmatpush1.msra.mxu0 0.0
    %758 = vmatprep.subr.mxu0 0.0
    %759 = vmatpush1.msra.mxu0 0.0
    %760 = vmatprep.subr.mxu0 0.0
    %761 = vmatpush1.msra.mxu0 0.0
    %762 = vmatprep.subr.mxu0 0.0
    %763 = vmatpush1.msra.mxu0 0.0
    %764 = vmatprep.subr.mxu0 0.0
    %765 = vmatpush1.msra.mxu0 0.0
    %766 = vmatprep.subr.mxu0 0.0
    %767 = vmatpush1.msra.mxu0 0.0
    %768 = vmatprep.subr.mxu0 0.0
    %769 = vmatpush1.msra.mxu0 0.0
    %770 = vmatprep.subr.mxu0 0.0
    %771 = vmatpush1.msra.mxu0 0.0
    %772 = vmatprep.mubr.f32.mxu0 0.0
    %773 = vmatmul.mubr.f32.gmra.mrb[0].mxu0 %v703
    %v774 = vpop.f32.mrb[0].mxu0
    %v775 = vadd.f32 0.0, %v774
    %v776 = vpop.f32.mrb[0].mxu0
    %777 = vmatprep.mubr.f32.mxu0 0.0
    %778 = vmatmul.mubr.f32.gmra.mrb[0].mxu0 %v706
    %v779 = vpop.f32.mrb[0].mxu0
    %v780 = vadd.f32 0.0, %v779
    %v781 = vpop.f32.mrb[0].mxu0
    %782 = vdwg.mxu0
    %785 = vrot.lane.b32.xlu0 %v208, 120
    %v786 = vpop.permute.xlu0 %785
    %787 = vrot.lane.b32.xlu0 %v213, 120
    %v788 = vpop.permute.xlu0 %787
    %v792 = vsel %vm589, %v696, 0
    %v795 = vsel %vm589, %v697, 0
    %797 = vmatprep.subr.mxu0 0.0
    %798 = vmatpush1.msra.mxu0 %v786
    %799 = vmatprep.subr.mxu0 0.0
    %800 = vmatpush1.msra.mxu0 %v788
    %801 = vmatprep.subr.mxu0 0.0
    %802 = vmatpush1.msra.mxu0 0.0
    %803 = vmatprep.subr.mxu0 0.0
    %804 = vmatpush1.msra.mxu0 0.0
    %805 = vmatprep.subr.mxu0 0.0
    %806 = vmatpush1.msra.mxu0 0.0
    %807 = vmatprep.subr.mxu0 0.0
    %808 = vmatpush1.msra.mxu0 0.0
    %809 = vmatprep.subr.mxu0 0.0
    %810 = vmatpush1.msra.mxu0 0.0
    %811 = vmatprep.subr.mxu0 0.0
    %812 = vmatpush1.msra.mxu0 0.0
    %813 = vmatprep.subr.mxu0 0.0
    %814 = vmatpush1.msra.mxu0 0.0
    %815 = vmatprep.subr.mxu0 0.0
    %816 = vmatpush1.msra.mxu0 0.0
    %817 = vmatprep.subr.mxu0 0.0
    %818 = vmatpush1.msra.mxu0 0.0
    %819 = vmatprep.subr.mxu0 0.0
    %820 = vmatpush1.msra.mxu0 0.0
    %821 = vmatprep.subr.mxu0 0.0
    %822 = vmatpush1.msra.mxu0 0.0
    %823 = vmatprep.subr.mxu0 0.0
    %824 = vmatpush1.msra.mxu0 0.0
    %825 = vmatprep.subr.mxu0 0.0
    %826 = vmatpush1.msra.mxu0 0.0
    %827 = vmatprep.subr.mxu0 0.0
    %828 = vmatpush1.msra.mxu0 0.0
    %829 = vmatprep.subr.mxu0 0.0
    %830 = vmatpush1.msra.mxu0 0.0
    %831 = vmatprep.subr.mxu0 0.0
    %832 = vmatpush1.msra.mxu0 0.0
    %833 = vmatprep.subr.mxu0 0.0
    %834 = vmatpush1.msra.mxu0 0.0
    %835 = vmatprep.subr.mxu0 0.0
    %836 = vmatpush1.msra.mxu0 0.0
    %837 = vmatprep.subr.mxu0 0.0
    %838 = vmatpush1.msra.mxu0 0.0
    %839 = vmatprep.subr.mxu0 0.0
    %840 = vmatpush1.msra.mxu0 0.0
    %841 = vmatprep.subr.mxu0 0.0
    %842 = vmatpush1.msra.mxu0 0.0
    %843 = vmatprep.subr.mxu0 0.0
    %844 = vmatpush1.msra.mxu0 0.0
    %845 = vmatprep.subr.mxu0 0.0
    %846 = vmatpush1.msra.mxu0 0.0
    %847 = vmatprep.subr.mxu0 0.0
    %848 = vmatpush1.msra.mxu0 0.0
    %849 = vmatprep.subr.mxu0 0.0
    %850 = vmatpush1.msra.mxu0 0.0
    %851 = vmatprep.subr.mxu0 0.0
    %852 = vmatpush1.msra.mxu0 0.0
    %853 = vmatprep.subr.mxu0 0.0
    %854 = vmatpush1.msra.mxu0 0.0
    %855 = vmatprep.subr.mxu0 0.0
    %856 = vmatpush1.msra.mxu0 0.0
    %857 = vmatprep.subr.mxu0 0.0
    %858 = vmatpush1.msra.mxu0 0.0
    %859 = vmatprep.subr.mxu0 0.0
    %860 = vmatpush1.msra.mxu0 0.0
    %861 = vmatprep.mubr.f32.mxu0 0.0
    %862 = vmatmul.mubr.f32.gmra.mrb[0].mxu0 %v792
    %v863 = vpop.f32.mrb[0].mxu0
    %v864 = vadd.f32 0.0, %v863
    %v865 = vpop.f32.mrb[0].mxu0
    %866 = vmatprep.mubr.f32.mxu0 0.0
    %867 = vmatmul.mubr.f32.gmra.mrb[0].mxu0 %v795
    %v868 = vpop.f32.mrb[0].mxu0
    %v869 = vadd.f32 0.0, %v868
    %v870 = vpop.f32.mrb[0].mxu0
    %871 = vdwg.mxu0
    %872 = vrot.lane.b32.xlu0 %v208, 112
    %v873 = vpop.permute.xlu0 %872
    %874 = vrot.lane.b32.xlu0 %v213, 112
    %v875 = vpop.permute.xlu0 %874
    %v879 = vsel %vm589, %v698, 0
    %v882 = vsel %vm589, %v699, 0
    %884 = vmatprep.subr.mxu0 0.0
    %885 = vmatpush1.msra.mxu0 %v873
    %886 = vmatprep.subr.mxu0 0.0
    %887 = vmatpush1.msra.mxu0 %v875
    %888 = vmatprep.subr.mxu0 0.0
    %889 = vmatpush1.msra.mxu0 0.0
    %890 = vmatprep.subr.mxu0 0.0
    %891 = vmatpush1.msra.mxu0 0.0
    %892 = vmatprep.subr.mxu0 0.0
    %893 = vmatpush1.msra.mxu0 0.0
    %894 = vmatprep.subr.mxu0 0.0
    %895 = vmatpush1.msra.mxu0 0.0
    %896 = vmatprep.subr.mxu0 0.0
    %897 = vmatpush1.msra.mxu0 0.0
    %898 = vmatprep.subr.mxu0 0.0
    %899 = vmatpush1.msra.mxu0 0.0
    %900 = vmatprep.subr.mxu0 0.0
    %901 = vmatpush1.msra.mxu0 0.0
    %902 = vmatprep.subr.mxu0 0.0
    %903 = vmatpush1.msra.mxu0 0.0
    %904 = vmatprep.subr.mxu0 0.0
    %905 = vmatpush1.msra.mxu0 0.0
    %906 = vmatprep.subr.mxu0 0.0
    %907 = vmatpush1.msra.mxu0 0.0
    %908 = vmatprep.subr.mxu0 0.0
    %909 = vmatpush1.msra.mxu0 0.0
    %910 = vmatprep.subr.mxu0 0.0
    %911 = vmatpush1.msra.mxu0 0.0
    %912 = vmatprep.subr.mxu0 0.0
    %913 = vmatpush1.msra.mxu0 0.0
    %914 = vmatprep.subr.mxu0 0.0
    %915 = vmatpush1.msra.mxu0 0.0
    %916 = vmatprep.subr.mxu0 0.0
    %917 = vmatpush1.msra.mxu0 0.0
    %918 = vmatprep.subr.mxu0 0.0
    %919 = vmatpush1.msra.mxu0 0.0
    %920 = vmatprep.subr.mxu0 0.0
    %921 = vmatpush1.msra.mxu0 0.0
    %922 = vmatprep.subr.mxu0 0.0
    %923 = vmatpush1.msra.mxu0 0.0
    %924 = vmatprep.subr.mxu0 0.0
    %925 = vmatpush1.msra.mxu0 0.0
    %926 = vmatprep.subr.mxu0 0.0
    %927 = vmatpush1.msra.mxu0 0.0
    %928 = vmatprep.subr.mxu0 0.0
    %929 = vmatpush1.msra.mxu0 0.0
    %930 = vmatprep.subr.mxu0 0.0
    %931 = vmatpush1.msra.mxu0 0.0
    %932 = vmatprep.subr.mxu0 0.0
    %933 = vmatpush1.msra.mxu0 0.0
    %934 = vmatprep.subr.mxu0 0.0
    %935 = vmatpush1.msra.mxu0 0.0
    %936 = vmatprep.subr.mxu0 0.0
    %937 = vmatpush1.msra.mxu0 0.0
    %938 = vmatprep.subr.mxu0 0.0
    %939 = vmatpush1.msra.mxu0 0.0
    %940 = vmatprep.subr.mxu0 0.0
    %941 = vmatpush1.msra.mxu0 0.0
    %942 = vmatprep.subr.mxu0 0.0
    %943 = vmatpush1.msra.mxu0 0.0
    %944 = vmatprep.subr.mxu0 0.0
    %945 = vmatpush1.msra.mxu0 0.0
    %946 = vmatprep.subr.mxu0 0.0
    %947 = vmatpush1.msra.mxu0 0.0
    %948 = vmatprep.mubr.f32.mxu0 0.0
    %949 = vmatmul.mubr.f32.gmra.mrb[0].mxu0 %v879
    %v950 = vpop.f32.mrb[0].mxu0
    %v951 = vadd.f32 0.0, %v950
    %v952 = vpop.f32.mrb[0].mxu0
    %953 = vmatprep.mubr.f32.mxu0 0.0
    %954 = vmatmul.mubr.f32.gmra.mrb[0].mxu0 %v882
    %v955 = vpop.f32.mrb[0].mxu0
    %v956 = vadd.f32 0.0, %v955
    %v957 = vpop.f32.mrb[0].mxu0
    %958 = vdwg.mxu0
    %959 = vrot.lane.b32.xlu0 %v208, 104
    %v960 = vpop.permute.xlu0 %959
    %961 = vrot.lane.b32.xlu0 %v213, 104
    %v962 = vpop.permute.xlu0 %961
    %v966 = vsel %vm589, %v700, 0
    %v969 = vsel %vm589, %v701, 0
    %971 = vmatprep.subr.mxu0 0.0
    %972 = vmatpush1.msra.mxu0 %v960
    %973 = vmatprep.subr.mxu0 0.0
    %974 = vmatpush1.msra.mxu0 %v962
    %975 = vmatprep.subr.mxu0 0.0
    %976 = vmatpush1.msra.mxu0 0.0
    %977 = vmatprep.subr.mxu0 0.0
    %978 = vmatpush1.msra.mxu0 0.0
    %979 = vmatprep.subr.mxu0 0.0
    %980 = vmatpush1.msra.mxu0 0.0
    %981 = vmatprep.subr.mxu0 0.0
    %982 = vmatpush1.msra.mxu0 0.0
    %983 = vmatprep.subr.mxu0 0.0
    %984 = vmatpush1.msra.mxu0 0.0
    %985 = vmatprep.subr.mxu0 0.0
    %986 = vmatpush1.msra.mxu0 0.0
    %987 = vmatprep.subr.mxu0 0.0
    %988 = vmatpush1.msra.mxu0 0.0
    %989 = vmatprep.subr.mxu0 0.0
    %990 = vmatpush1.msra.mxu0 0.0
    %991 = vmatprep.subr.mxu0 0.0
    %992 = vmatpush1.msra.mxu0 0.0
    %993 = vmatprep.subr.mxu0 0.0
    %994 = vmatpush1.msra.mxu0 0.0
    %995 = vmatprep.subr.mxu0 0.0
    %996 = vmatpush1.msra.mxu0 0.0
    %997 = vmatprep.subr.mxu0 0.0
    %998 = vmatpush1.msra.mxu0 0.0
    %999 = vmatprep.subr.mxu0 0.0
    %1000 = vmatpush1.msra.mxu0 0.0
    %1001 = vmatprep.subr.mxu0 0.0
    %1002 = vmatpush1.msra.mxu0 0.0
    %1003 = vmatprep.subr.mxu0 0.0
    %1004 = vmatpush1.msra.mxu0 0.0
    %1005 = vmatprep.subr.mxu0 0.0
    %1006 = vmatpush1.msra.mxu0 0.0
    %1007 = vmatprep.subr.mxu0 0.0
    %1008 = vmatpush1.msra.mxu0 0.0
    %1009 = vmatprep.subr.mxu0 0.0
    %1010 = vmatpush1.msra.mxu0 0.0
    %1011 = vmatprep.subr.mxu0 0.0
    %1012 = vmatpush1.msra.mxu0 0.0
    %1013 = vmatprep.subr.mxu0 0.0
    %1014 = vmatpush1.msra.mxu0 0.0
    %1015 = vmatprep.subr.mxu0 0.0
    %1016 = vmatpush1.msra.mxu0 0.0
    %1017 = vmatprep.subr.mxu0 0.0
    %1018 = vmatpush1.msra.mxu0 0.0
    %1019 = vmatprep.subr.mxu0 0.0
    %1020 = vmatpush1.msra.mxu0 0.0
    %1021 = vmatprep.subr.mxu0 0.0
    %1022 = vmatpush1.msra.mxu0 0.0
    %1023 = vmatprep.subr.mxu0 0.0
    %1024 = vmatpush1.msra.mxu0 0.0
    %1025 = vmatprep.subr.mxu0 0.0
    %1026 = vmatpush1.msra.mxu0 0.0
    %1027 = vmatprep.subr.mxu0 0.0
    %1028 = vmatpush1.msra.mxu0 0.0
    %1029 = vmatprep.subr.mxu0 0.0
    %1030 = vmatpush1.msra.mxu0 0.0
    %1031 = vmatprep.subr.mxu0 0.0
    %1032 = vmatpush1.msra.mxu0 0.0
    %1033 = vmatprep.subr.mxu0 0.0
    %1034 = vmatpush1.msra.mxu0 0.0
    %1035 = vmatprep.mubr.f32.mxu0 0.0
    %1036 = vmatmul.mubr.f32.gmra.mrb[0].mxu0 %v966
    %v1037 = vpop.f32.mrb[0].mxu0
    %v1038 = vadd.f32 0.0, %v1037
    %v1039 = vpop.f32.mrb[0].mxu0
    %1040 = vmatprep.mubr.f32.mxu0 0.0
    %1041 = vmatmul.mubr.f32.gmra.mrb[0].mxu0 %v969
    %v1042 = vpop.f32.mrb[0].mxu0
    %v1043 = vadd.f32 0.0, %v1042
    %v1044 = vpop.f32.mrb[0].mxu0
    %1045 = vdwg.mxu0
    %1048 = vrot.lane.b32.xlu0 %v864, 8
    %v1049 = vpop.permute.xlu0 %1048
    %1050 = vrot.lane.b32.xlu0 %v869, 8
    %v1051 = vpop.permute.xlu0 %1050
    %1056 = vrot.lane.b32.xlu0 %v951, 16
    %v1057 = vpop.permute.xlu0 %1056
    %1058 = vrot.lane.b32.xlu0 %v956, 16
    %v1059 = vpop.permute.xlu0 %1058
    %1064 = vrot.lane.b32.xlu0 %v1038, 24
    %v1065 = vpop.permute.xlu0 %1064
    %1066 = vrot.lane.b32.xlu0 %v1043, 24
    %v1067 = vpop.permute.xlu0 %1066
    %v1070 = vsel %vm222, %v775, %v1049
    %v1071 = vsel %vm222, %v780, %v1051
    %v1072 = vsel %vm589, %v1070, %v1057
    %v1073 = vsel %vm589, %v1071, %v1059
    %vm1074 = vcmask 195584
    %v1075 = vsel %vm1074, %v1072, %v1065
    %v1076 = vsel %vm1074, %v1073, %v1067
    %1077 = vrot.lane.b32.xlu0 %v24, 32
    %v1078 = vpop.permute.xlu0 %1077
    %1079 = vrot.lane.b32.xlu0 %v25, 32
    %v1080 = vpop.permute.xlu0 %1079
    %1081 = vrot.lane.b32.xlu0 %v26, 32
    %v1082 = vpop.permute.xlu0 %1081
    %1083 = vrot.lane.b32.xlu0 %v27, 32
    %v1084 = vpop.permute.xlu0 %1083
    %1089 = vrot.lane.b32.xlu0 %v32, 32
    %v1090 = vpop.permute.xlu0 %1089
    %v1093 = vsel %vm33, %v1075, 0
    %v1096 = vsel %vm33, %v1076, 0
    %1098 = vmatprep.subr.mxu0 0.0
    %1099 = vmatpush1.msra.mxu0 %v1078
    %1100 = vmatprep.subr.mxu0 0.0
    %1101 = vmatpush1.msra.mxu0 %v1080
    %1102 = vmatprep.subr.mxu0 0.0
    %1103 = vmatpush1.msra.mxu0 %v1082
    %1104 = vmatprep.subr.mxu0 0.0
    %1105 = vmatpush1.msra.mxu0 %v1084
    %1106 = vmatprep.subr.mxu0 0.0
    %1107 = vmatpush1.msra.mxu0 0.0
    %1108 = vmatprep.subr.mxu0 0.0
    %1109 = vmatpush1.msra.mxu0 0.0
    %1110 = vmatprep.subr.mxu0 0.0
    %1111 = vmatpush1.msra.mxu0 0.0
    %1112 = vmatprep.subr.mxu0 0.0
    %1113 = vmatpush1.msra.mxu0 0.0
    %1114 = vmatprep.subr.mxu0 0.0
    %1115 = vmatpush1.msra.mxu0 0.0
    %1116 = vmatprep.subr.mxu0 0.0
    %1117 = vmatpush1.msra.mxu0 0.0
    %1118 = vmatprep.subr.mxu0 0.0
    %1119 = vmatpush1.msra.mxu0 0.0
    %1120 = vmatprep.subr.mxu0 0.0
    %1121 = vmatpush1.msra.mxu0 0.0
    %1122 = vmatprep.subr.mxu0 0.0
    %1123 = vmatpush1.msra.mxu0 0.0
    %1124 = vmatprep.subr.mxu0 0.0
    %1125 = vmatpush1.msra.mxu0 0.0
    %1126 = vmatprep.subr.mxu0 0.0
    %1127 = vmatpush1.msra.mxu0 0.0
    %1128 = vmatprep.subr.mxu0 0.0
    %1129 = vmatpush1.msra.mxu0 0.0
    %1130 = vmatprep.subr.mxu0 0.0
    %1131 = vmatpush1.msra.mxu0 0.0
    %1132 = vmatprep.subr.mxu0 0.0
    %1133 = vmatpush1.msra.mxu0 0.0
    %1134 = vmatprep.subr.mxu0 0.0
    %1135 = vmatpush1.msra.mxu0 0.0
    %1136 = vmatprep.subr.mxu0 0.0
    %1137 = vmatpush1.msra.mxu0 0.0
    %1138 = vmatprep.subr.mxu0 0.0
    %1139 = vmatpush1.msra.mxu0 0.0
    %1140 = vmatprep.subr.mxu0 0.0
    %1141 = vmatpush1.msra.mxu0 0.0
    %1142 = vmatprep.subr.mxu0 0.0
    %1143 = vmatpush1.msra.mxu0 0.0
    %1144 = vmatprep.subr.mxu0 0.0
    %1145 = vmatpush1.msra.mxu0 0.0
    %1146 = vmatprep.subr.mxu0 0.0
    %1147 = vmatpush1.msra.mxu0 0.0
    %1148 = vmatprep.subr.mxu0 0.0
    %1149 = vmatpush1.msra.mxu0 0.0
    %1150 = vmatprep.subr.mxu0 0.0
    %1151 = vmatpush1.msra.mxu0 0.0
    %1152 = vmatprep.subr.mxu0 0.0
    %1153 = vmatpush1.msra.mxu0 0.0
    %1154 = vmatprep.subr.mxu0 0.0
    %1155 = vmatpush1.msra.mxu0 0.0
    %1156 = vmatprep.subr.mxu0 0.0
    %1157 = vmatpush1.msra.mxu0 0.0
    %1158 = vmatprep.subr.mxu0 0.0
    %1159 = vmatpush1.msra.mxu0 0.0
    %1160 = vmatprep.subr.mxu0 0.0
    %1161 = vmatpush1.msra.mxu0 0.0
    %1162 = vmatprep.mubr.f32.mxu0 0.0
    %1163 = vmatmul.mubr.f32.gmra.mrb[0].mxu0 %v1093
    %v1164 = vpop.f32.mrb[0].mxu0
    %v1165 = vadd.f32 %v1090, %v1164
    %v1166 = vpop.f32.mrb[0].mxu0
    %1167 = vmatprep.mubr.f32.mxu0 0.0
    %1168 = vmatmul.mubr.f32.gmra.mrb[0].mxu0 %v1096
    %v1169 = vpop.f32.mrb[0].mxu0
    %v1170 = vadd.f32 %v1090, %v1169
    %v1171 = vpop.f32.mrb[0].mxu0
    %1172 = vdwg.mxu0
    %v1173 = vadd.f32 %v18, %v1165
    %v1174 = vadd.f32 %v19, %v1170
    %v1175 = vsel %vm33, %v1173, 0.0
    %1176 = vadd.xlane.f32.xlu0 %v1175
    %v1177 = vpop.xlane.xlu0 %1176
    %v1178 = vsel %vm33, %v1174, 0.0
    %1179 = vadd.xlane.f32.xlu0 %v1178
    %v1180 = vpop.xlane.xlu0 %1179
    %v1181 = vrcp.pop 32.0
    %v1182 = vmul.f32 %v1177, %v1181
    %v1183 = vmul.f32 %v1180, %v1181
    %v1184 = vsub.f32 %v1173, %v1182
    %v1185 = vsub.f32 %v1174, %v1183
    %v1186 = vmul.f32 %v1184, %v1184
    %v1187 = vmul.f32 %v1185, %v1185
    %v1188 = vsel %vm33, %v1186, 0.0
    %1189 = vadd.xlane.f32.xlu0 %v1188
    %v1190 = vpop.xlane.xlu0 %1189
    %v1191 = vsel %vm33, %v1187, 0.0
    %1192 = vadd.xlane.f32.xlu0 %v1191
    %v1193 = vpop.xlane.xlu0 %1192
    %v1194 = vmul.f32 %v1190, %v1181
    %v1195 = vmul.f32 %v1193, %v1181
    %v1196 = vadd.f32 %v1194, 1e-05
    %v1197 = vadd.f32 %v1195, 1e-05
    %v1198 = vrsqrt.pop %v1196
    %v1199 = vrsqrt.pop %v1197
    %v1200 = vmul.f32 %v1184, %v1198
    %v1201 = vmul.f32 %v1185, %v1199
    %v1202 = vlaneseq
    %v1203 = vshrl.u32 %v1202, 7
    %v1204 = vsub.s32 1, %v1203
    %v1205 = vrot.slane %v28, %v1204
    %1207 = vrot.lane.b32.xlu0 %v1205, 96
    %v1208 = vpop.permute.xlu0 %1207
    %v1210 = vmul.f32 %v1200, %v1208
    %v1211 = vmul.f32 %v1201, %v1208
    %1212 = vrot.lane.b32.xlu0 %v1205, 64
    %v1213 = vpop.permute.xlu0 %1212
    %v1215 = vadd.f32 %v1210, %v1213
    %v1216 = vadd.f32 %v1211, %v1213
    %v1217 = vld [vmem:[%s2] sm:$0xff]
    %v1218 = vld [vmem:[%s2 + $0x8] sm:$0xff]
    %v1219 = vld [vmem:[%s2 + $0x10] sm:$0xff]
    %v1220 = vld [vmem:[%s2 + $0x18] sm:$0xff]
    %v1221 = vld [vmem:[%s2 + $0x20] sm:$0xff]
    %v1222 = vld [vmem:[%s2 + $0x28] sm:$0xff]
    %v1223 = vld [vmem:[%s2 + $0x30] sm:$0xff]
    %v1224 = vld [vmem:[%s2 + $0x38] sm:$0xff]
    %v1225 = vld [vmem:[%s2 + $0x40] sm:$0x1]
    %v1226 = vlaneseq
    %v1227 = vshrl.u32 %v1226, 7
    %v1228 = vsub.s32 0, %v1227
    %v1229 = vrot.slane %v1225, %v1228
    %v1231 = vsel %vm33, %v1215, 0
    %v1234 = vsel %vm33, %v1216, 0
    %1236 = vmatprep.subr.mxu0 0.0
    %1237 = vmatpush1.msra.mxu0 %v1217
    %1238 = vmatprep.subr.mxu0 0.0
    %1239 = vmatpush1.msra.mxu0 %v1218
    %1240 = vmatprep.subr.mxu0 0.0
    %1241 = vmatpush1.msra.mxu0 %v1219
    %1242 = vmatprep.subr.mxu0 0.0
    %1243 = vmatpush1.msra.mxu0 %v1220
    %1244 = vmatprep.subr.mxu0 0.0
    %1245 = vmatpush1.msra.mxu0 0.0
    %1246 = vmatprep.subr.mxu0 0.0
    %1247 = vmatpush1.msra.mxu0 0.0
    %1248 = vmatprep.subr.mxu0 0.0
    %1249 = vmatpush1.msra.mxu0 0.0
    %1250 = vmatprep.subr.mxu0 0.0
    %1251 = vmatpush1.msra.mxu0 0.0
    %1252 = vmatprep.subr.mxu0 0.0
    %1253 = vmatpush1.msra.mxu0 0.0
    %1254 = vmatprep.subr.mxu0 0.0
    %1255 = vmatpush1.msra.mxu0 0.0
    %1256 = vmatprep.subr.mxu0 0.0
    %1257 = vmatpush1.msra.mxu0 0.0
    %1258 = vmatprep.subr.mxu0 0.0
    %1259 = vmatpush1.msra.mxu0 0.0
    %1260 = vmatprep.subr.mxu0 0.0
    %1261 = vmatpush1.msra.mxu0 0.0
    %1262 = vmatprep.subr.mxu0 0.0
    %1263 = vmatpush1.msra.mxu0 0.0
    %1264 = vmatprep.subr.mxu0 0.0
    %1265 = vmatpush1.msra.mxu0 0.0
    %1266 = vmatprep.subr.mxu0 0.0
    %1267 = vmatpush1.msra.mxu0 0.0
    %1268 = vmatprep.subr.mxu0 0.0
    %1269 = vmatpush1.msra.mxu0 0.0
    %1270 = vmatprep.subr.mxu0 0.0
    %1271 = vmatpush1.msra.mxu0 0.0
    %1272 = vmatprep.subr.mxu0 0.0
    %1273 = vmatpush1.msra.mxu0 0.0
    %1274 = vmatprep.subr.mxu0 0.0
    %1275 = vmatpush1.msra.mxu0 0.0
    %1276 = vmatprep.subr.mxu0 0.0
    %1277 = vmatpush1.msra.mxu0 0.0
    %1278 = vmatprep.subr.mxu0 0.0
    %1279 = vmatpush1.msra.mxu0 0.0
    %1280 = vmatprep.subr.mxu0 0.0
    %1281 = vmatpush1.msra.mxu0 0.0
    %1282 = vmatprep.subr.mxu0 0.0
    %1283 = vmatpush1.msra.mxu0 0.0
    %1284 = vmatprep.subr.mxu0 0.0
    %1285 = vmatpush1.msra.mxu0 0.0
    %1286 = vmatprep.subr.mxu0 0.0
    %1287 = vmatpush1.msra.mxu0 0.0
    %1288 = vmatprep.subr.mxu0 0.0
    %1289 = vmatpush1.msra.mxu0 0.0
    %1290 = vmatprep.subr.mxu0 0.0
    %1291 = vmatpush1.msra.mxu0 0.0
    %1292 = vmatprep.subr.mxu0 0.0
    %1293 = vmatpush1.msra.mxu0 0.0
    %1294 = vmatprep.subr.mxu0 0.0
    %1295 = vmatpush1.msra.mxu0 0.0
    %1296 = vmatprep.subr.mxu0 0.0
    %1297 = vmatpush1.msra.mxu0 0.0
    %1298 = vmatprep.subr.mxu0 0.0
    %1299 = vmatpush1.msra.mxu0 0.0
    %1300 = vmatprep.mubr.f32.mxu0 0.0
    %1301 = vmatmul.mubr.f32.gmra.mrb[0].mxu0 %v1231
    %v1302 = vpop.f32.mrb[0].mxu0
    %v1303 = vadd.f32 %v1229, %v1302
    %v1304 = vpop.f32.mrb[0].mxu0
    %1305 = vmatprep.mubr.f32.mxu0 0.0
    %1306 = vmatmul.mubr.f32.gmra.mrb[0].mxu0 %v1234
    %v1307 = vpop.f32.mrb[0].mxu0
    %v1308 = vadd.f32 %v1229, %v1307
    %v1309 = vpop.f32.mrb[0].mxu0
    %1310 = vdwg.mxu0
    %v1311 = vmax.f32 %v1303, 0.0
    %v1312 = vmax.f32 %v1308, 0.0
    %vm1313 = vcmask 523264
    %v1315 = vsel %vm1313, %v1311, 0
    %v1318 = vsel %vm1313, %v1312, 0
    %v1321 = vsel %vm1313, %v1221, 0
    %v1324 = vsel %vm1313, %v1222, 0
    %v1327 = vsel %vm1313, %v1223, 0
    %v1330 = vsel %vm1313, %v1224, 0
    %1332 = vmatprep.subr.mxu0 0.0
    %1333 = vmatpush1.xpose.msra.mxu0 %v1321
    %1334 = vmatprep.subr.mxu0 0.0
    %1335 = vmatpush1.xpose.msra.mxu0 %v1324
    %1336 = vmatprep.subr.mxu0 0.0
    %1337 = vmatpush1.xpose.msra.mxu0 %v1327
    %1338 = vmatprep.subr.mxu0 0.0
    %1339 = vmatpush1.xpose.msra.mxu0 %v1330
    %1340 = vmatprep.subr.mxu0 0.0
    %1341 = vmatpush1.xpose.msra.mxu0 0.0
    %1342 = vmatprep.subr.mxu0 0.0
    %1343 = vmatpush1.xpose.msra.mxu0 0.0
    %1344 = vmatprep.subr.mxu0 0.0
    %1345 = vmatpush1.xpose.msra.mxu0 0.0
    %1346 = vmatprep.subr.mxu0 0.0
    %1347 = vmatpush1.xpose.msra.mxu0 0.0
    %1348 = vmatprep.subr.mxu0 0.0
    %1349 = vmatpush1.xpose.msra.mxu0 0.0
    %1350 = vmatprep.subr.mxu0 0.0
    %1351 = vmatpush1.xpose.msra.mxu0 0.0
    %1352 = vmatprep.subr.mxu0 0.0
    %1353 = vmatpush1.xpose.msra.mxu0 0.0
    %1354 = vmatprep.subr.mxu0 0.0
    %1355 = vmatpush1.xpose.msra.mxu0 0.0
    %1356 = vmatprep.subr.mxu0 0.0
    %1357 = vmatpush1.xpose.msra.mxu0 0.0
    %1358 = vmatprep.subr.mxu0 0.0
    %1359 = vmatpush1.xpose.msra.mxu0 0.0
    %1360 = vmatprep.subr.mxu0 0.0
    %1361 = vmatpush1.xpose.msra.mxu0 0.0
    %1362 = vmatprep.subr.mxu0 0.0
    %1363 = vmatpush1.xpose.msra.mxu0 0.0
    %1364 = vmatprep.subr.mxu0 0.0
    %1365 = vmatpush1.xpose.msra.mxu0 0.0
    %1366 = vmatprep.subr.mxu0 0.0
    %1367 = vmatpush1.xpose.msra.mxu0 0.0
    %1368 = vmatprep.subr.mxu0 0.0
    %1369 = vmatpush1.xpose.msra.mxu0 0.0
    %1370 = vmatprep.subr.mxu0 0.0
    %1371 = vmatpush1.xpose.msra.mxu0 0.0
    %1372 = vmatprep.subr.mxu0 0.0
    %1373 = vmatpush1.xpose.msra.mxu0 0.0
    %1374 = vmatprep.subr.mxu0 0.0
    %1375 = vmatpush1.xpose.msra.mxu0 0.0
    %1376 = vmatprep.subr.mxu0 0.0
    %1377 = vmatpush1.xpose.msra.mxu0 0.0
    %1378 = vmatprep.subr.mxu0 0.0
    %1379 = vmatpush1.xpose.msra.mxu0 0.0
    %1380 = vmatprep.subr.mxu0 0.0
    %1381 = vmatpush1.xpose.msra.mxu0 0.0
    %1382 = vmatprep.subr.mxu0 0.0
    %1383 = vmatpush1.xpose.msra.mxu0 0.0
    %1384 = vmatprep.subr.mxu0 0.0
    %1385 = vmatpush1.xpose.msra.mxu0 0.0
    %1386 = vmatprep.subr.mxu0 0.0
    %1387 = vmatpush1.xpose.msra.mxu0 0.0
    %1388 = vmatprep.subr.mxu0 0.0
    %1389 = vmatpush1.xpose.msra.mxu0 0.0
    %1390 = vmatprep.subr.mxu0 0.0
    %1391 = vmatpush1.xpose.msra.mxu0 0.0
    %1392 = vmatprep.subr.mxu0 0.0
    %1393 = vmatpush1.xpose.msra.mxu0 0.0
    %1394 = vmatprep.subr.mxu0 0.0
    %1395 = vmatpush1.xpose.msra.mxu0 0.0
    %1396 = vmatprep.mubr.f32.mxu0 0.0
    %1397 = vmatmul.mubr.f32.gmra.mrb[0].mxu0 %v1315
    %v1398 = vpop.f32.mrb[0].mxu0
    %v1399 = vadd.f32 %v1205, %v1398
    %v1400 = vpop.f32.mrb[0].mxu0
    %1401 = vmatprep.mubr.f32.mxu0 0.0
    %1402 = vmatmul.mubr.f32.gmra.mrb[0].mxu0 %v1318
    %v1403 = vpop.f32.mrb[0].mxu0
    %v1404 = vadd.f32 %v1205, %v1403
    %v1405 = vpop.f32.mrb[0].mxu0
    %1406 = vdwg.mxu0
    %v1407 = vadd.f32 %v1215, %v1399
    %v1408 = vadd.f32 %v1216, %v1404
    %v1409 = vsel %vm33, %v1407, 0.0
    %1410 = vadd.xlane.f32.xlu0 %v1409
    %v1411 = vpop.xlane.xlu0 %1410
    %v1412 = vsel %vm33, %v1408, 0.0
    %1413 = vadd.xlane.f32.xlu0 %v1412
    %v1414 = vpop.xlane.xlu0 %1413
    %v1415 = vmul.f32 %v1411, %v1181
    %v1416 = vmul.f32 %v1414, %v1181
    %v1417 = vsub.f32 %v1407, %v1415
    %v1418 = vsub.f32 %v1408, %v1416
    %v1419 = vmul.f32 %v1417, %v1417
    %v1420 = vmul.f32 %v1418, %v1418
    %v1421 = vsel %vm33, %v1419, 0.0
    %1422 = vadd.xlane.f32.xlu0 %v1421
    %v1423 = vpop.xlane.xlu0 %1422
    %v1424 = vsel %vm33, %v1420, 0.0
    %1425 = vadd.xlane.f32.xlu0 %v1424
    %v1426 = vpop.xlane.xlu0 %1425
    %v1427 = vmul.f32 %v1423, %v1181
    %v1428 = vmul.f32 %v1426, %v1181
    %v1429 = vadd.f32 %v1427, 1e-05
    %v1430 = vadd.f32 %v1428, 1e-05
    %v1431 = vrsqrt.pop %v1429
    %v1432 = vrsqrt.pop %v1430
    %v1433 = vmul.f32 %v1417, %v1431
    %v1434 = vmul.f32 %v1418, %v1432
    %1435 = vrot.lane.b32.xlu0 %v1205, 32
    %v1436 = vpop.permute.xlu0 %1435
    %v1438 = vmul.f32 %v1433, %v1436
    %v1439 = vmul.f32 %v1434, %v1436
    %v1440 = vlaneseq
    %v1441 = vshrl.u32 %v1440, 7
    %v1442 = vsub.s32 2, %v1441
    %v1443 = vrot.slane %v28, %v1442
    %v1444 = vadd.f32 %v1438, %v1443
    %v1445 = vadd.f32 %v1439, %v1443
    %1446 = vst.msk [vmem:[#allocation2] sm:$0xff] %vm33, %v1444
    %1447 = vst.msk [vmem:[#allocation2 + $0x8] sm:$0xff] %vm33, %v1445
    // Predicated region
    $region18: #{tpu_custom_call.1} parent=1 // pred_check
      _
    $region19: #{tpu_custom_call.1} parent=1 // pred_check_branch
      %1449 = sbr.rel (0) target = $region21
    $region20: #{tpu_custom_call.1} parent=1 // pred_region
      %s1451 = ssub.s32 256, 256
      %1452 = vsyncadd [#allocation3], %s1451
      %s1453 = sshll.u32 [#allocation2], 4
      %s1454 = int_to_ptr.vmem [resolvable:$true] %s1453
      %1459 = dma.vmem_to_hbm [thread:$0]  %s1454, 256, %s4, [#allocation3], 128, 128, 8
    $region21: #{tpu_custom_call.1} parent=1 // pred_fallthru
      _
    // Predicated region
    $region22: #{tpu_custom_call.1} parent=1 // pred_check
      _
    $region23: #{tpu_custom_call.1} parent=1 // pred_check_branch
      %1461 = sbr.rel (0) target = $region25
    $region24: #{tpu_custom_call.1} parent=1 // pred_region
      %1462 = dma.done [#allocation3], 256
    $region25: #{tpu_custom_call.1} parent=1 // pred_fallthru
      _
    %1463 = vsyncpa [#allocation3], 1

</llo_original>
